<compile_context>
chip_gen: v5e
topology: v5e:2x2
jax: 0.10.0
libtpu: 0.0.40
codegen_flags: <defaults>
</compile_context>

<pallas_src>
import functools
import math

import jax
import jax.numpy as jnp
from jax import lax
from jax.experimental import pallas as pl
from jax.experimental.pallas import tpu as pltpu


def _round_up(x, m):
    return ((x + m - 1) // m) * m


def _pick_seq_tile(S, target):
    """Largest divisor of S that is <= target.

    Sequence padding would corrupt h/c, so we require Ts | S.  (A prime S degenerates
    to Ts=1 — a perf cliff, not a correctness issue.)
    """
    for t in range(min(S, target), 0, -1):
        if S % t == 0:
            return t
    return S


def _approx_sigmoid(x):
    # exp(-x) runs on the EUP; the approximate reciprocal keeps the divide on the EUP
    # slot too (instead of a VALU Newton sequence) — this sits on the serial
    # recurrence critical path.
    return pl.reciprocal(1.0 + jnp.exp(-x), approx=True)


def sentiment_lstm_kernel(emb_ref, w_ih_t_ref, w_hh_t_ref, b_ref,
                          w_fc_ref, b_fc_ref, out_ref, h_ref, c_ref, gx_ref):
    """One (batch-block, sequence-tile) grid step of the LSTM recurrence.

    emb_ref    : (Ts, Bb, Ep)    f32 embedded tokens for this tile (zero padded)
    w_ih_t_ref : (Ep, 4*Hp)      bf16 input->gate weights, gate-major, lane-aligned
    w_hh_t_ref : (Hp, 4*Hp)      bf16 hidden->gate weights, gate-major, lane-aligned
    b_ref      : (1, 4*Hp)       f32 combined bias (b_ih + b_hh), padded cols = 0
    w_fc_ref   : (1, Hp)         f32 final linear weight row (padded cols = 0)
    b_fc_ref   : (1, 1)          f32 final linear bias
    out_ref    : (Bb, 128)       sigmoid(logits) broadcast across lanes
    h_ref/c_ref: (Bb, Hp)        f32 VMEM scratch carried across the sequence axis
    gx_ref     : (Ts*Bb, 4*Hp)   f32 VMEM scratch: hoisted input projection

    Zero padding is exact: padded H lanes of h/c stay exactly 0 because the padded
    weight/bias columns are 0 and c starts at 0; padded batch rows are sliced off in
    the wrapper.
    """
    Ts, Bb, Ep = emb_ref.shape
    Hp = w_hh_t_ref.shape[0]
    s = pl.program_id(1)

    @pl.when(s == 0)
    def _init():
        h_ref[...] = jnp.zeros_like(h_ref)
        c_ref[...] = jnp.zeros_like(c_ref)

    # Hoisted input projection: ONE bf16 MXU matmul for the whole tile (off the
    # sequential critical path), f32 accumulate, bias folded in.
    x = emb_ref[...].reshape(Ts * Bb, Ep).astype(jnp.bfloat16)
    gx_ref[...] = jnp.dot(x, w_ih_t_ref[...],
                          preferred_element_type=jnp.float32) + b_ref[...]

    w_hh_t = w_hh_t_ref[...]   # bf16, resident across the timestep loop

    # TODO(synk): make W_hh weight-stationary in the MXU (matmul_push_rhs/acc_lhs/pop)
    # to remove the per-step weight refill; only h @ W_hh remains on the serial path.
    def step(t, carry):
        h, c = carry
        row = pl.multiple_of(t * Bb, Bb)
        gx = gx_ref[pl.ds(row, Bb), :]                                # (Bb, 4*Hp) f32
        gates = gx + jnp.dot(h.astype(jnp.bfloat16), w_hh_t,
                             preferred_element_type=jnp.float32)
        # PyTorch gate order i, f, g, o; each slice is a lane-aligned 128-wide block.
        i_g = _approx_sigmoid(gates[:, 0 * Hp:1 * Hp])
        f_g = _approx_sigmoid(gates[:, 1 * Hp:2 * Hp])
        g_g = jnp.tanh(gates[:, 2 * Hp:3 * Hp])
        o_g = _approx_sigmoid(gates[:, 3 * Hp:4 * Hp])
        c = f_g * c + i_g * g_g
        h = o_g * jnp.tanh(c)
        return h, c

    # Bounded-unroll fori_loop: keeps LLO scheduling visibility without blowing up
    # instruction count / live ranges when Ts is large.
    unroll = math.gcd(Ts, 8)
    h, c = lax.fori_loop(0, Ts, step, (h_ref[...], c_ref[...]), unroll=unroll)
    h_ref[...] = h
    c_ref[...] = c

    # NOTE: the output block index is constant along the (arbitrary) sequence axis, so
    # the block stays VMEM-resident and is written back to HBM once, after the final
    # sequence tile of this batch block.  Do NOT make the out index_map vary with the
    # sequence axis or mark that axis "parallel" — earlier steps would emit garbage.
    @pl.when(s == pl.num_programs(1) - 1)
    def _finalize():
        # Final Linear as VPU multiply + XLU lane reduce (avoid an N=1 MXU matmul);
        # emit a lane-dense (Bb, 128) output slab (sliced to (B, 1) in the wrapper).
        logits = jnp.sum(h * w_fc_ref[...], axis=-1, keepdims=True) + b_fc_ref[...]
        out_ref[...] = jnp.broadcast_to(jax.nn.sigmoid(logits), out_ref.shape)


def _prep_gate_weight(w, in_dim, H, in_pad, Hp):
    """(4H, in_dim) PyTorch gate weight -> (in_pad, 4*Hp) bf16, gate-major, zero padded."""
    w4 = w.reshape(4, H, in_dim)
    wt = jnp.transpose(w4, (2, 0, 1))                      # (in_dim, 4, H)
    wt = jnp.pad(wt, ((0, in_pad - in_dim), (0, 0), (0, Hp - H)))
    return wt.reshape(in_pad, 4 * Hp).astype(jnp.bfloat16)


@functools.partial(jax.jit, static_argnames=("seq_tile",))
def sentiment_model_forward(x_tokens, params, seq_tile=None):
    """x_tokens: (S, B) int32 token ids.  Returns (B, 1) float32 probabilities."""
    emb_table = params["embedding"]            # (V, E)
    w_ih = params["w_ih"]                      # (4H, E)
    w_hh = params["w_hh"]                      # (4H, H)
    b_ih = params["b_ih"]                      # (4H,)
    b_hh = params["b_hh"]                      # (4H,)
    w_fc = params["w_fc"]                      # (1, H)
    b_fc = params["b_fc"]                      # (1,)

    S, B = x_tokens.shape
    E = emb_table.shape[1]
    H = w_hh.shape[1]

    # Batch blocks: when B >= 16 split the independent batch rows into two
    # sublane-aligned blocks on a leading "parallel" grid axis so v7x's two
    # TensorCores each take one half (a cheap serial outer loop on v5e/v6e).
    if B >= 16:
        nb = 2
        Bp = _round_up(B, 16)
    else:
        nb = 1
        Bp = _round_up(max(B, 8), 8)
    Bb = Bp // nb
    Ep = _round_up(E, 128)
    Hp = _round_up(H, 128)

    if seq_tile is None:
        # Fill the MXU rows of the hoisted projection (Ts*Bb >= 256 where S allows);
        # capped to bound VMEM scratch and in-kernel unrolling.
        target = min(64, max(8, -(-256 // Bb)))
        Ts = _pick_seq_tile(S, target)
    else:
        Ts = seq_tile
    assert S % Ts == 0, "sequence tile must divide S (padded timesteps would corrupt h/c)"

    # Glue: embedding gather + weight layout prep (gate-major, lane-aligned, padded).
    embedded = emb_table[x_tokens].astype(jnp.float32)                       # (S, B, E)
    embedded = jnp.pad(embedded, ((0, 0), (0, Bp - B), (0, Ep - E)))         # (S, Bp, Ep)

    w_ih_t = _prep_gate_weight(w_ih, E, H, Ep, Hp)                           # (Ep, 4*Hp) bf16
    w_hh_t = _prep_gate_weight(w_hh, H, H, Hp, Hp)                           # (Hp, 4*Hp) bf16
    b = jnp.pad((b_ih + b_hh).reshape(4, H), ((0, 0), (0, Hp - H)))
    b = b.reshape(1, 4 * Hp).astype(jnp.float32)                             # (1, 4*Hp)
    w_fc_row = jnp.pad(w_fc.astype(jnp.float32), ((0, 0), (0, Hp - H)))      # (1, Hp)
    b_fc2 = b_fc.reshape(1, 1).astype(jnp.float32)                           # (1, 1)

    # VMEM budget with 2x headroom (keeps well under v7x's 64 MiB physical VMEM).
    emb_tile_bytes = Ts * Bb * Ep * 4                       # streamed f32 tile (double-buffered)
    weight_bytes = (Ep + Hp) * 4 * Hp * 2 + (4 * Hp + Hp + 1) * 4
    scratch_bytes = (2 * Bb * Hp + Ts * Bb * 4 * Hp) * 4
    est = 2 * emb_tile_bytes + 2 * weight_bytes + scratch_bytes + 2 * Bb * 128 * 4
    vmem_limit = int(min(max(2 * est, 16 * 1024 * 1024), 48 * 1024 * 1024))

    grid = (nb, S // Ts)
    out = pl.pallas_call(
        sentiment_lstm_kernel,
        out_shape=jax.ShapeDtypeStruct((Bp, 128), jnp.float32),
        grid_spec=pltpu.PrefetchScalarGridSpec(
            num_scalar_prefetch=0,
            grid=grid,
            in_specs=[
                # streamed (double-buffered) sequence tiles for this batch block
                pl.BlockSpec((Ts, Bb, Ep), lambda bb, s: (s, bb, 0)),
                # resident weights / biases (constant index maps)
                pl.BlockSpec((Ep, 4 * Hp), lambda bb, s: (0, 0)),
                pl.BlockSpec((Hp, 4 * Hp), lambda bb, s: (0, 0)),
                pl.BlockSpec((1, 4 * Hp), lambda bb, s: (0, 0)),
                pl.BlockSpec((1, Hp), lambda bb, s: (0, 0)),
                pl.BlockSpec((1, 1), lambda bb, s: (0, 0)),
            ],
            # Constant along the sequence axis: single end-of-sequence writeback per
            # batch block (see kernel NOTE).
            out_specs=pl.BlockSpec((Bb, 128), lambda bb, s: (bb, 0)),
            scratch_shapes=[
                pltpu.VMEM((Bb, Hp), jnp.float32),             # h carried across seq tiles
                pltpu.VMEM((Bb, Hp), jnp.float32),             # c carried across seq tiles
                pltpu.VMEM((Ts * Bb, 4 * Hp), jnp.float32),    # hoisted input projection
            ],
        ),
        compiler_params=pltpu.CompilerParams(
            # batch blocks are independent -> "parallel" (v7x megacore);
            # the sequence recurrence is strictly ordered -> "arbitrary".
            dimension_semantics=("parallel", "arbitrary"),
            vmem_limit_bytes=vmem_limit,
        ),
    )(embedded, w_ih_t, w_hh_t, b, w_fc_row, b_fc2)

    return out[:B, :1]


def reference_forward(x_tokens, params):
    """Pure-JAX f32 reference matching PyTorch semantics."""
    emb = params["embedding"][x_tokens]        # (S, B, E)
    H = params["w_hh"].shape[1]
    w_ih_t = params["w_ih"].T
    w_hh_t = params["w_hh"].T
    b = params["b_ih"] + params["b_hh"]

    def step(carry, x_t):
        h, c = carry
        gates = x_t @ w_ih_t + h @ w_hh_t + b
        i = jax.nn.sigmoid(gates[:, 0 * H:1 * H])
        f = jax.nn.sigmoid(gates[:, 1 * H:2 * H])
        g = jnp.tanh(gates[:, 2 * H:3 * H])
        o = jax.nn.sigmoid(gates[:, 3 * H:4 * H])
        c = f * c + i * g
        h = o * jnp.tanh(c)
        return (h, c), None

    B = x_tokens.shape[1]
    h0 = jnp.zeros((B, H), jnp.float32)
    c0 = jnp.zeros((B, H), jnp.float32)
    (h_final, _), _ = lax.scan(step, (h0, c0), emb)
    logits = h_final @ params["w_fc"].T + params["b_fc"]
    return jax.nn.sigmoid(logits)


def make_params(key, vocab_size, embedding_dim, hidden_dim):
    ks = jax.random.split(key, 7)
    scale = 0.1
    return {
        "embedding": scale * jax.random.normal(ks[0], (vocab_size, embedding_dim), jnp.float32),
        "w_ih": scale * jax.random.normal(ks[1], (4 * hidden_dim, embedding_dim), jnp.float32),
        "w_hh": scale * jax.random.normal(ks[2], (4 * hidden_dim, hidden_dim), jnp.float32),
        "b_ih": scale * jax.random.normal(ks[3], (4 * hidden_dim,), jnp.float32),
        "b_hh": scale * jax.random.normal(ks[4], (4 * hidden_dim,), jnp.float32),
        "w_fc": scale * jax.random.normal(ks[5], (1, hidden_dim), jnp.float32),
        "b_fc": scale * jax.random.normal(ks[6], (1,), jnp.float32),
    }


if __name__ == "__main__":
    VOCAB, EMBED, HIDDEN = 50, 32, 32

    key = jax.random.PRNGKey(0)
    k_param, k_tok, k_tok2 = jax.random.split(key, 3)
    params = make_params(k_param, VOCAB, EMBED, HIDDEN)

    # Tolerance relaxed vs the f32 reference: bf16 MXU inputs + approx-reciprocal
    # gate sigmoids introduce ~1e-3-level differences.
    TOL = 1e-2

    # Config 1: SEQ=8, BATCH=2.  Default tiling (grid (1,1)) and seq_tile=2
    # (grid (1,4)) — the latter exercises the VMEM-carried h/c across grid steps.
    SEQ, BATCH = 8, 2
    x_tokens = jax.random.randint(k_tok, (SEQ, BATCH), 0, VOCAB, dtype=jnp.int32)
    ref = jax.block_until_ready(reference_forward(x_tokens, params))

    out_full = jax.block_until_ready(sentiment_model_forward(x_tokens, params))
    out_tiled = jax.block_until_ready(sentiment_model_forward(x_tokens, params, seq_tile=2))
    assert out_full.shape == (BATCH, 1), out_full.shape
    assert jnp.allclose(out_full, ref, atol=TOL), (out_full, ref)
    assert jnp.allclose(out_tiled, ref, atol=TOL), (out_tiled, ref)

    # Config 2: BATCH=16 -> two batch blocks on the leading "parallel" grid axis
    # (sharded across v7x's two TensorCores), plus multiple sequence tiles.
    SEQ2, BATCH2 = 12, 16
    x_tokens2 = jax.random.randint(k_tok2, (SEQ2, BATCH2), 0, VOCAB, dtype=jnp.int32)
    ref2 = jax.block_until_ready(reference_forward(x_tokens2, params))
    out2 = jax.block_until_ready(sentiment_model_forward(x_tokens2, params, seq_tile=4))
    assert out2.shape == (BATCH2, 1), out2.shape
    assert jnp.allclose(out2, ref2, atol=TOL), (out2, ref2)

    print("KERNEL_OK")
</pallas_src>

<mosaic_0001>
module attributes {stable_mosaic.version = 11 : i64} {
  func.func @sentiment_lstm_kernel(%arg0: i32, %arg1: i32, %arg2: memref<8x8x128xf32, #tpu.memory_space<vmem>>, %arg3: memref<128x512xbf16, #tpu.memory_space<vmem>>, %arg4: memref<128x512xbf16, #tpu.memory_space<vmem>>, %arg5: memref<1x512xf32, #tpu.memory_space<vmem>>, %arg6: memref<1x128xf32, #tpu.memory_space<vmem>>, %arg7: memref<1x1xf32, #tpu.memory_space<vmem>>, %arg8: memref<8x128xf32, #tpu.memory_space<vmem>>, %arg9: memref<8x128xf32, #tpu.memory_space<vmem>>, %arg10: memref<8x128xf32, #tpu.memory_space<vmem>>, %arg11: memref<64x512xf32, #tpu.memory_space<vmem>>) attributes {dimension_semantics = [#tpu.dimension_semantics<parallel>, #tpu.dimension_semantics<arbitrary>], iteration_bounds = array<i64: 1, 1>, scalar_prefetch = 0 : i64, scratch_operands = 3 : i64, tpu.core_type = #tpu.core_type<tc>, window_params = [{transform_indices = @transform_0, window_bounds = array<i64: 8, 8, 128>}, {pipeline_mode = #tpu.pipeline_mode<synchronous>, transform_indices = @transform_1, window_bounds = array<i64: 128, 512>}, {pipeline_mode = #tpu.pipeline_mode<synchronous>, transform_indices = @transform_2, window_bounds = array<i64: 128, 512>}, {pipeline_mode = #tpu.pipeline_mode<synchronous>, transform_indices = @transform_3, window_bounds = array<i64: 1, 512>}, {pipeline_mode = #tpu.pipeline_mode<synchronous>, transform_indices = @transform_4, window_bounds = array<i64: 1, 128>}, {pipeline_mode = #tpu.pipeline_mode<synchronous>, transform_indices = @transform_5, window_bounds = array<i64: 1, 1>}, {transform_indices = @transform_6, window_bounds = array<i64: 8, 128>}]} {
    %c0_i32 = arith.constant 0 : i32
    %0 = arith.cmpi eq, %arg1, %c0_i32 : i32
    %1 = arith.extui %0 : i1 to i32
    %c0_i32_0 = arith.constant 0 : i32
    %2 = arith.cmpi ne, %1, %c0_i32_0 : i32
    scf.if %2 {
      %cst_94 = arith.constant 0.000000e+00 : f32
      %300 = vector.broadcast %cst_94 : f32 to vector<8x128xf32>
      %c0_95 = arith.constant 0 : index
      %c0_96 = arith.constant 0 : index
      %301 = vector.load %arg9[%c0_95, %c0_96] : memref<8x128xf32, #tpu.memory_space<vmem>>, vector<8x128xf32>
      tpu.vector_store %arg9[%c0_95, %c0_96], %300 {strides = array<i32>} : memref<8x128xf32, #tpu.memory_space<vmem>>, vector<8x128xf32>,
      %cst_97 = arith.constant 0.000000e+00 : f32
      %302 = vector.broadcast %cst_97 : f32 to vector<8x128xf32>
      %c0_98 = arith.constant 0 : index
      %c0_99 = arith.constant 0 : index
      %303 = vector.load %arg10[%c0_98, %c0_99] : memref<8x128xf32, #tpu.memory_space<vmem>>, vector<8x128xf32>
      tpu.vector_store %arg10[%c0_98, %c0_99], %302 {strides = array<i32>} : memref<8x128xf32, #tpu.memory_space<vmem>>, vector<8x128xf32>,
    } else {
    }
    %c0 = arith.constant 0 : index
    %c0_1 = arith.constant 0 : index
    %c0_2 = arith.constant 0 : index
    %3 = vector.load %arg2[%c0, %c0_1, %c0_2] : memref<8x8x128xf32, #tpu.memory_space<vmem>>, vector<8x8x128xf32>
    %4 = vector.shape_cast %3 : vector<8x8x128xf32> to vector<64x128xf32>
    %5 = arith.truncf %4 : vector<64x128xf32> to vector<64x128xbf16>
    %c0_3 = arith.constant 0 : index
    %c0_4 = arith.constant 0 : index
    %6 = vector.load %arg3[%c0_3, %c0_4] : memref<128x512xbf16, #tpu.memory_space<vmem>>, vector<128x512xbf16>
    %cst = arith.constant dense<0.000000e+00> : vector<64x512xf32>
    %7 = tpu.matmul %5, %6, %cst {dimension_numbers = #tpu.dot_dimension_numbers<[1], [0], [0], [1], [0, 0, 1, 1], [], []>} : vector<64x128xbf16>, vector<128x512xbf16>, vector<64x512xf32> -> vector<64x512xf32>
    %c0_5 = arith.constant 0 : index
    %c0_6 = arith.constant 0 : index
    %8 = vector.load %arg5[%c0_5, %c0_6] : memref<1x512xf32, #tpu.memory_space<vmem>>, vector<1x512xf32>
    %9 = vector.broadcast %8 : vector<1x512xf32> to vector<64x512xf32>
    %10 = arith.addf %7, %9 : vector<64x512xf32>
    %c0_7 = arith.constant 0 : index
    %c0_8 = arith.constant 0 : index
    %11 = vector.load %arg11[%c0_7, %c0_8] : memref<64x512xf32, #tpu.memory_space<vmem>>, vector<64x512xf32>
    tpu.vector_store %arg11[%c0_7, %c0_8], %10 {strides = array<i32>} : memref<64x512xf32, #tpu.memory_space<vmem>>, vector<64x512xf32>,
    %c0_9 = arith.constant 0 : index
    %c0_10 = arith.constant 0 : index
    %12 = vector.load %arg4[%c0_9, %c0_10] : memref<128x512xbf16, #tpu.memory_space<vmem>>, vector<128x512xbf16>
    %c0_11 = arith.constant 0 : index
    %c0_12 = arith.constant 0 : index
    %13 = vector.load %arg9[%c0_11, %c0_12] : memref<8x128xf32, #tpu.memory_space<vmem>>, vector<8x128xf32>
    %c0_13 = arith.constant 0 : index
    %c0_14 = arith.constant 0 : index
    %14 = vector.load %arg10[%c0_13, %c0_14] : memref<8x128xf32, #tpu.memory_space<vmem>>, vector<8x128xf32>
    %c0_i32_15 = arith.constant 0 : i32
    %c8_i32 = arith.constant 8 : i32
    %15 = arith.muli %c0_i32_15, %c8_i32 : i32
    %16 = tpu.assume_multiple %15, 8 : i32
    %17 = arith.index_cast %16 : i32 to index
    %c0_16 = arith.constant 0 : index
    %18 = vector.load %arg11[%17, %c0_16] : memref<64x512xf32, #tpu.memory_space<vmem>>, vector<8x512xf32>
    %19 = arith.truncf %13 : vector<8x128xf32> to vector<8x128xbf16>
    %cst_17 = arith.constant dense<0.000000e+00> : vector<8x512xf32>
    %20 = tpu.matmul %19, %12, %cst_17 {dimension_numbers = #tpu.dot_dimension_numbers<[1], [0], [0], [1], [0, 0, 1, 1], [], []>} : vector<8x128xbf16>, vector<128x512xbf16>, vector<8x512xf32> -> vector<8x512xf32>
    %21 = arith.addf %18, %20 : vector<8x512xf32>
    %22 = vector.extract_strided_slice %21 {offsets = [0, 0], sizes = [8, 128], strides = [1, 1]} : vector<8x512xf32> to vector<8x128xf32>
    %cst_18 = arith.constant 0.000000e+00 : f32
    %23 = vector.broadcast %cst_18 : f32 to vector<8x128xf32>
    %24 = arith.subf %23, %22 : vector<8x128xf32>
    %25 = math.exp %24 : vector<8x128xf32>
    %cst_19 = arith.constant 1.000000e+00 : f32
    %26 = vector.broadcast %cst_19 : f32 to vector<8x128xf32>
    %27 = arith.addf %26, %25 : vector<8x128xf32>
    %28 = tpu.reciprocal %27 {approx = true} : vector<8x128xf32> -> vector<8x128xf32>
    %29 = vector.extract_strided_slice %21 {offsets = [0, 128], sizes = [8, 128], strides = [1, 1]} : vector<8x512xf32> to vector<8x128xf32>
    %cst_20 = arith.constant 0.000000e+00 : f32
    %30 = vector.broadcast %cst_20 : f32 to vector<8x128xf32>
    %31 = arith.subf %30, %29 : vector<8x128xf32>
    %32 = math.exp %31 : vector<8x128xf32>
    %cst_21 = arith.constant 1.000000e+00 : f32
    %33 = vector.broadcast %cst_21 : f32 to vector<8x128xf32>
    %34 = arith.addf %33, %32 : vector<8x128xf32>
    %35 = tpu.reciprocal %34 {approx = true} : vector<8x128xf32> -> vector<8x128xf32>
    %36 = vector.extract_strided_slice %21 {offsets = [0, 256], sizes = [8, 128], strides = [1, 1]} : vector<8x512xf32> to vector<8x128xf32>
    %37 = math.tanh %36 : vector<8x128xf32>
    %38 = vector.extract_strided_slice %21 {offsets = [0, 384], sizes = [8, 128], strides = [1, 1]} : vector<8x512xf32> to vector<8x128xf32>
    %cst_22 = arith.constant 0.000000e+00 : f32
    %39 = vector.broadcast %cst_22 : f32 to vector<8x128xf32>
    %40 = arith.subf %39, %38 : vector<8x128xf32>
    %41 = math.exp %40 : vector<8x128xf32>
    %cst_23 = arith.constant 1.000000e+00 : f32
    %42 = vector.broadcast %cst_23 : f32 to vector<8x128xf32>
    %43 = arith.addf %42, %41 : vector<8x128xf32>
    %44 = tpu.reciprocal %43 {approx = true} : vector<8x128xf32> -> vector<8x128xf32>
    %45 = arith.mulf %35, %14 : vector<8x128xf32>
    %46 = arith.mulf %28, %37 : vector<8x128xf32>
    %47 = arith.addf %45, %46 : vector<8x128xf32>
    %48 = math.tanh %47 : vector<8x128xf32>
    %49 = arith.mulf %44, %48 : vector<8x128xf32>
    %c1_i32 = arith.constant 1 : i32
    %c8_i32_24 = arith.constant 8 : i32
    %50 = arith.muli %c1_i32, %c8_i32_24 : i32
    %51 = tpu.assume_multiple %50, 8 : i32
    %52 = arith.index_cast %51 : i32 to index
    %c0_25 = arith.constant 0 : index
    %53 = vector.load %arg11[%52, %c0_25] : memref<64x512xf32, #tpu.memory_space<vmem>>, vector<8x512xf32>
    %54 = arith.truncf %49 : vector<8x128xf32> to vector<8x128xbf16>
    %cst_26 = arith.constant dense<0.000000e+00> : vector<8x512xf32>
    %55 = tpu.matmul %54, %12, %cst_26 {dimension_numbers = #tpu.dot_dimension_numbers<[1], [0], [0], [1], [0, 0, 1, 1], [], []>} : vector<8x128xbf16>, vector<128x512xbf16>, vector<8x512xf32> -> vector<8x512xf32>
    %56 = arith.addf %53, %55 : vector<8x512xf32>
    %57 = vector.extract_strided_slice %56 {offsets = [0, 0], sizes = [8, 128], strides = [1, 1]} : vector<8x512xf32> to vector<8x128xf32>
    %cst_27 = arith.constant 0.000000e+00 : f32
    %58 = vector.broadcast %cst_27 : f32 to vector<8x128xf32>
    %59 = arith.subf %58, %57 : vector<8x128xf32>
    %60 = math.exp %59 : vector<8x128xf32>
    %cst_28 = arith.constant 1.000000e+00 : f32
    %61 = vector.broadcast %cst_28 : f32 to vector<8x128xf32>
    %62 = arith.addf %61, %60 : vector<8x128xf32>
    %63 = tpu.reciprocal %62 {approx = true} : vector<8x128xf32> -> vector<8x128xf32>
    %64 = vector.extract_strided_slice %56 {offsets = [0, 128], sizes = [8, 128], strides = [1, 1]} : vector<8x512xf32> to vector<8x128xf32>
    %cst_29 = arith.constant 0.000000e+00 : f32
    %65 = vector.broadcast %cst_29 : f32 to vector<8x128xf32>
    %66 = arith.subf %65, %64 : vector<8x128xf32>
    %67 = math.exp %66 : vector<8x128xf32>
    %cst_30 = arith.constant 1.000000e+00 : f32
    %68 = vector.broadcast %cst_30 : f32 to vector<8x128xf32>
    %69 = arith.addf %68, %67 : vector<8x128xf32>
    %70 = tpu.reciprocal %69 {approx = true} : vector<8x128xf32> -> vector<8x128xf32>
    %71 = vector.extract_strided_slice %56 {offsets = [0, 256], sizes = [8, 128], strides = [1, 1]} : vector<8x512xf32> to vector<8x128xf32>
    %72 = math.tanh %71 : vector<8x128xf32>
    %73 = vector.extract_strided_slice %56 {offsets = [0, 384], sizes = [8, 128], strides = [1, 1]} : vector<8x512xf32> to vector<8x128xf32>
    %cst_31 = arith.constant 0.000000e+00 : f32
    %74 = vector.broadcast %cst_31 : f32 to vector<8x128xf32>
    %75 = arith.subf %74, %73 : vector<8x128xf32>
    %76 = math.exp %75 : vector<8x128xf32>
    %cst_32 = arith.constant 1.000000e+00 : f32
    %77 = vector.broadcast %cst_32 : f32 to vector<8x128xf32>
    %78 = arith.addf %77, %76 : vector<8x128xf32>
    %79 = tpu.reciprocal %78 {approx = true} : vector<8x128xf32> -> vector<8x128xf32>
    %80 = arith.mulf %70, %47 : vector<8x128xf32>
    %81 = arith.mulf %63, %72 : vector<8x128xf32>
    %82 = arith.addf %80, %81 : vector<8x128xf32>
    %83 = math.tanh %82 : vector<8x128xf32>
    %84 = arith.mulf %79, %83 : vector<8x128xf32>
    %c2_i32 = arith.constant 2 : i32
    %c8_i32_33 = arith.constant 8 : i32
    %85 = arith.muli %c2_i32, %c8_i32_33 : i32
    %86 = tpu.assume_multiple %85, 8 : i32
    %87 = arith.index_cast %86 : i32 to index
    %c0_34 = arith.constant 0 : index
    %88 = vector.load %arg11[%87, %c0_34] : memref<64x512xf32, #tpu.memory_space<vmem>>, vector<8x512xf32>
    %89 = arith.truncf %84 : vector<8x128xf32> to vector<8x128xbf16>
    %cst_35 = arith.constant dense<0.000000e+00> : vector<8x512xf32>
    %90 = tpu.matmul %89, %12, %cst_35 {dimension_numbers = #tpu.dot_dimension_numbers<[1], [0], [0], [1], [0, 0, 1, 1], [], []>} : vector<8x128xbf16>, vector<128x512xbf16>, vector<8x512xf32> -> vector<8x512xf32>
    %91 = arith.addf %88, %90 : vector<8x512xf32>
    %92 = vector.extract_strided_slice %91 {offsets = [0, 0], sizes = [8, 128], strides = [1, 1]} : vector<8x512xf32> to vector<8x128xf32>
    %cst_36 = arith.constant 0.000000e+00 : f32
    %93 = vector.broadcast %cst_36 : f32 to vector<8x128xf32>
    %94 = arith.subf %93, %92 : vector<8x128xf32>
    %95 = math.exp %94 : vector<8x128xf32>
    %cst_37 = arith.constant 1.000000e+00 : f32
    %96 = vector.broadcast %cst_37 : f32 to vector<8x128xf32>
    %97 = arith.addf %96, %95 : vector<8x128xf32>
    %98 = tpu.reciprocal %97 {approx = true} : vector<8x128xf32> -> vector<8x128xf32>
    %99 = vector.extract_strided_slice %91 {offsets = [0, 128], sizes = [8, 128], strides = [1, 1]} : vector<8x512xf32> to vector<8x128xf32>
    %cst_38 = arith.constant 0.000000e+00 : f32
    %100 = vector.broadcast %cst_38 : f32 to vector<8x128xf32>
    %101 = arith.subf %100, %99 : vector<8x128xf32>
    %102 = math.exp %101 : vector<8x128xf32>
    %cst_39 = arith.constant 1.000000e+00 : f32
    %103 = vector.broadcast %cst_39 : f32 to vector<8x128xf32>
    %104 = arith.addf %103, %102 : vector<8x128xf32>
    %105 = tpu.reciprocal %104 {approx = true} : vector<8x128xf32> -> vector<8x128xf32>
    %106 = vector.extract_strided_slice %91 {offsets = [0, 256], sizes = [8, 128], strides = [1, 1]} : vector<8x512xf32> to vector<8x128xf32>
    %107 = math.tanh %106 : vector<8x128xf32>
    %108 = vector.extract_strided_slice %91 {offsets = [0, 384], sizes = [8, 128], strides = [1, 1]} : vector<8x512xf32> to vector<8x128xf32>
    %cst_40 = arith.constant 0.000000e+00 : f32
    %109 = vector.broadcast %cst_40 : f32 to vector<8x128xf32>
    %110 = arith.subf %109, %108 : vector<8x128xf32>
    %111 = math.exp %110 : vector<8x128xf32>
    %cst_41 = arith.constant 1.000000e+00 : f32
    %112 = vector.broadcast %cst_41 : f32 to vector<8x128xf32>
    %113 = arith.addf %112, %111 : vector<8x128xf32>
    %114 = tpu.reciprocal %113 {approx = true} : vector<8x128xf32> -> vector<8x128xf32>
    %115 = arith.mulf %105, %82 : vector<8x128xf32>
    %116 = arith.mulf %98, %107 : vector<8x128xf32>
    %117 = arith.addf %115, %116 : vector<8x128xf32>
    %118 = math.tanh %117 : vector<8x128xf32>
    %119 = arith.mulf %114, %118 : vector<8x128xf32>
    %c3_i32 = arith.constant 3 : i32
    %c8_i32_42 = arith.constant 8 : i32
    %120 = arith.muli %c3_i32, %c8_i32_42 : i32
    %121 = tpu.assume_multiple %120, 8 : i32
    %122 = arith.index_cast %121 : i32 to index
    %c0_43 = arith.constant 0 : index
    %123 = vector.load %arg11[%122, %c0_43] : memref<64x512xf32, #tpu.memory_space<vmem>>, vector<8x512xf32>
    %124 = arith.truncf %119 : vector<8x128xf32> to vector<8x128xbf16>
    %cst_44 = arith.constant dense<0.000000e+00> : vector<8x512xf32>
    %125 = tpu.matmul %124, %12, %cst_44 {dimension_numbers = #tpu.dot_dimension_numbers<[1], [0], [0], [1], [0, 0, 1, 1], [], []>} : vector<8x128xbf16>, vector<128x512xbf16>, vector<8x512xf32> -> vector<8x512xf32>
    %126 = arith.addf %123, %125 : vector<8x512xf32>
    %127 = vector.extract_strided_slice %126 {offsets = [0, 0], sizes = [8, 128], strides = [1, 1]} : vector<8x512xf32> to vector<8x128xf32>
    %cst_45 = arith.constant 0.000000e+00 : f32
    %128 = vector.broadcast %cst_45 : f32 to vector<8x128xf32>
    %129 = arith.subf %128, %127 : vector<8x128xf32>
    %130 = math.exp %129 : vector<8x128xf32>
    %cst_46 = arith.constant 1.000000e+00 : f32
    %131 = vector.broadcast %cst_46 : f32 to vector<8x128xf32>
    %132 = arith.addf %131, %130 : vector<8x128xf32>
    %133 = tpu.reciprocal %132 {approx = true} : vector<8x128xf32> -> vector<8x128xf32>
    %134 = vector.extract_strided_slice %126 {offsets = [0, 128], sizes = [8, 128], strides = [1, 1]} : vector<8x512xf32> to vector<8x128xf32>
    %cst_47 = arith.constant 0.000000e+00 : f32
    %135 = vector.broadcast %cst_47 : f32 to vector<8x128xf32>
    %136 = arith.subf %135, %134 : vector<8x128xf32>
    %137 = math.exp %136 : vector<8x128xf32>
    %cst_48 = arith.constant 1.000000e+00 : f32
    %138 = vector.broadcast %cst_48 : f32 to vector<8x128xf32>
    %139 = arith.addf %138, %137 : vector<8x128xf32>
    %140 = tpu.reciprocal %139 {approx = true} : vector<8x128xf32> -> vector<8x128xf32>
    %141 = vector.extract_strided_slice %126 {offsets = [0, 256], sizes = [8, 128], strides = [1, 1]} : vector<8x512xf32> to vector<8x128xf32>
    %142 = math.tanh %141 : vector<8x128xf32>
    %143 = vector.extract_strided_slice %126 {offsets = [0, 384], sizes = [8, 128], strides = [1, 1]} : vector<8x512xf32> to vector<8x128xf32>
    %cst_49 = arith.constant 0.000000e+00 : f32
    %144 = vector.broadcast %cst_49 : f32 to vector<8x128xf32>
    %145 = arith.subf %144, %143 : vector<8x128xf32>
    %146 = math.exp %145 : vector<8x128xf32>
    %cst_50 = arith.constant 1.000000e+00 : f32
    %147 = vector.broadcast %cst_50 : f32 to vector<8x128xf32>
    %148 = arith.addf %147, %146 : vector<8x128xf32>
    %149 = tpu.reciprocal %148 {approx = true} : vector<8x128xf32> -> vector<8x128xf32>
    %150 = arith.mulf %140, %117 : vector<8x128xf32>
    %151 = arith.mulf %133, %142 : vector<8x128xf32>
    %152 = arith.addf %150, %151 : vector<8x128xf32>
    %153 = math.tanh %152 : vector<8x128xf32>
    %154 = arith.mulf %149, %153 : vector<8x128xf32>
    %c4_i32 = arith.constant 4 : i32
    %c8_i32_51 = arith.constant 8 : i32
    %155 = arith.muli %c4_i32, %c8_i32_51 : i32
    %156 = tpu.assume_multiple %155, 8 : i32
    %157 = arith.index_cast %156 : i32 to index
    %c0_52 = arith.constant 0 : index
    %158 = vector.load %arg11[%157, %c0_52] : memref<64x512xf32, #tpu.memory_space<vmem>>, vector<8x512xf32>
    %159 = arith.truncf %154 : vector<8x128xf32> to vector<8x128xbf16>
    %cst_53 = arith.constant dense<0.000000e+00> : vector<8x512xf32>
    %160 = tpu.matmul %159, %12, %cst_53 {dimension_numbers = #tpu.dot_dimension_numbers<[1], [0], [0], [1], [0, 0, 1, 1], [], []>} : vector<8x128xbf16>, vector<128x512xbf16>, vector<8x512xf32> -> vector<8x512xf32>
    %161 = arith.addf %158, %160 : vector<8x512xf32>
    %162 = vector.extract_strided_slice %161 {offsets = [0, 0], sizes = [8, 128], strides = [1, 1]} : vector<8x512xf32> to vector<8x128xf32>
    %cst_54 = arith.constant 0.000000e+00 : f32
    %163 = vector.broadcast %cst_54 : f32 to vector<8x128xf32>
    %164 = arith.subf %163, %162 : vector<8x128xf32>
    %165 = math.exp %164 : vector<8x128xf32>
    %cst_55 = arith.constant 1.000000e+00 : f32
    %166 = vector.broadcast %cst_55 : f32 to vector<8x128xf32>
    %167 = arith.addf %166, %165 : vector<8x128xf32>
    %168 = tpu.reciprocal %167 {approx = true} : vector<8x128xf32> -> vector<8x128xf32>
    %169 = vector.extract_strided_slice %161 {offsets = [0, 128], sizes = [8, 128], strides = [1, 1]} : vector<8x512xf32> to vector<8x128xf32>
    %cst_56 = arith.constant 0.000000e+00 : f32
    %170 = vector.broadcast %cst_56 : f32 to vector<8x128xf32>
    %171 = arith.subf %170, %169 : vector<8x128xf32>
    %172 = math.exp %171 : vector<8x128xf32>
    %cst_57 = arith.constant 1.000000e+00 : f32
    %173 = vector.broadcast %cst_57 : f32 to vector<8x128xf32>
    %174 = arith.addf %173, %172 : vector<8x128xf32>
    %175 = tpu.reciprocal %174 {approx = true} : vector<8x128xf32> -> vector<8x128xf32>
    %176 = vector.extract_strided_slice %161 {offsets = [0, 256], sizes = [8, 128], strides = [1, 1]} : vector<8x512xf32> to vector<8x128xf32>
    %177 = math.tanh %176 : vector<8x128xf32>
    %178 = vector.extract_strided_slice %161 {offsets = [0, 384], sizes = [8, 128], strides = [1, 1]} : vector<8x512xf32> to vector<8x128xf32>
    %cst_58 = arith.constant 0.000000e+00 : f32
    %179 = vector.broadcast %cst_58 : f32 to vector<8x128xf32>
    %180 = arith.subf %179, %178 : vector<8x128xf32>
    %181 = math.exp %180 : vector<8x128xf32>
    %cst_59 = arith.constant 1.000000e+00 : f32
    %182 = vector.broadcast %cst_59 : f32 to vector<8x128xf32>
    %183 = arith.addf %182, %181 : vector<8x128xf32>
    %184 = tpu.reciprocal %183 {approx = true} : vector<8x128xf32> -> vector<8x128xf32>
    %185 = arith.mulf %175, %152 : vector<8x128xf32>
    %186 = arith.mulf %168, %177 : vector<8x128xf32>
    %187 = arith.addf %185, %186 : vector<8x128xf32>
    %188 = math.tanh %187 : vector<8x128xf32>
    %189 = arith.mulf %184, %188 : vector<8x128xf32>
    %c5_i32 = arith.constant 5 : i32
    %c8_i32_60 = arith.constant 8 : i32
    %190 = arith.muli %c5_i32, %c8_i32_60 : i32
    %191 = tpu.assume_multiple %190, 8 : i32
    %192 = arith.index_cast %191 : i32 to index
    %c0_61 = arith.constant 0 : index
    %193 = vector.load %arg11[%192, %c0_61] : memref<64x512xf32, #tpu.memory_space<vmem>>, vector<8x512xf32>
    %194 = arith.truncf %189 : vector<8x128xf32> to vector<8x128xbf16>
    %cst_62 = arith.constant dense<0.000000e+00> : vector<8x512xf32>
    %195 = tpu.matmul %194, %12, %cst_62 {dimension_numbers = #tpu.dot_dimension_numbers<[1], [0], [0], [1], [0, 0, 1, 1], [], []>} : vector<8x128xbf16>, vector<128x512xbf16>, vector<8x512xf32> -> vector<8x512xf32>
    %196 = arith.addf %193, %195 : vector<8x512xf32>
    %197 = vector.extract_strided_slice %196 {offsets = [0, 0], sizes = [8, 128], strides = [1, 1]} : vector<8x512xf32> to vector<8x128xf32>
    %cst_63 = arith.constant 0.000000e+00 : f32
    %198 = vector.broadcast %cst_63 : f32 to vector<8x128xf32>
    %199 = arith.subf %198, %197 : vector<8x128xf32>
    %200 = math.exp %199 : vector<8x128xf32>
    %cst_64 = arith.constant 1.000000e+00 : f32
    %201 = vector.broadcast %cst_64 : f32 to vector<8x128xf32>
    %202 = arith.addf %201, %200 : vector<8x128xf32>
    %203 = tpu.reciprocal %202 {approx = true} : vector<8x128xf32> -> vector<8x128xf32>
    %204 = vector.extract_strided_slice %196 {offsets = [0, 128], sizes = [8, 128], strides = [1, 1]} : vector<8x512xf32> to vector<8x128xf32>
    %cst_65 = arith.constant 0.000000e+00 : f32
    %205 = vector.broadcast %cst_65 : f32 to vector<8x128xf32>
    %206 = arith.subf %205, %204 : vector<8x128xf32>
    %207 = math.exp %206 : vector<8x128xf32>
    %cst_66 = arith.constant 1.000000e+00 : f32
    %208 = vector.broadcast %cst_66 : f32 to vector<8x128xf32>
    %209 = arith.addf %208, %207 : vector<8x128xf32>
    %210 = tpu.reciprocal %209 {approx = true} : vector<8x128xf32> -> vector<8x128xf32>
    %211 = vector.extract_strided_slice %196 {offsets = [0, 256], sizes = [8, 128], strides = [1, 1]} : vector<8x512xf32> to vector<8x128xf32>
    %212 = math.tanh %211 : vector<8x128xf32>
    %213 = vector.extract_strided_slice %196 {offsets = [0, 384], sizes = [8, 128], strides = [1, 1]} : vector<8x512xf32> to vector<8x128xf32>
    %cst_67 = arith.constant 0.000000e+00 : f32
    %214 = vector.broadcast %cst_67 : f32 to vector<8x128xf32>
    %215 = arith.subf %214, %213 : vector<8x128xf32>
    %216 = math.exp %215 : vector<8x128xf32>
    %cst_68 = arith.constant 1.000000e+00 : f32
    %217 = vector.broadcast %cst_68 : f32 to vector<8x128xf32>
    %218 = arith.addf %217, %216 : vector<8x128xf32>
    %219 = tpu.reciprocal %218 {approx = true} : vector<8x128xf32> -> vector<8x128xf32>
    %220 = arith.mulf %210, %187 : vector<8x128xf32>
    %221 = arith.mulf %203, %212 : vector<8x128xf32>
    %222 = arith.addf %220, %221 : vector<8x128xf32>
    %223 = math.tanh %222 : vector<8x128xf32>
    %224 = arith.mulf %219, %223 : vector<8x128xf32>
    %c6_i32 = arith.constant 6 : i32
    %c8_i32_69 = arith.constant 8 : i32
    %225 = arith.muli %c6_i32, %c8_i32_69 : i32
    %226 = tpu.assume_multiple %225, 8 : i32
    %227 = arith.index_cast %226 : i32 to index
    %c0_70 = arith.constant 0 : index
    %228 = vector.load %arg11[%227, %c0_70] : memref<64x512xf32, #tpu.memory_space<vmem>>, vector<8x512xf32>
    %229 = arith.truncf %224 : vector<8x128xf32> to vector<8x128xbf16>
    %cst_71 = arith.constant dense<0.000000e+00> : vector<8x512xf32>
    %230 = tpu.matmul %229, %12, %cst_71 {dimension_numbers = #tpu.dot_dimension_numbers<[1], [0], [0], [1], [0, 0, 1, 1], [], []>} : vector<8x128xbf16>, vector<128x512xbf16>, vector<8x512xf32> -> vector<8x512xf32>
    %231 = arith.addf %228, %230 : vector<8x512xf32>
    %232 = vector.extract_strided_slice %231 {offsets = [0, 0], sizes = [8, 128], strides = [1, 1]} : vector<8x512xf32> to vector<8x128xf32>
    %cst_72 = arith.constant 0.000000e+00 : f32
    %233 = vector.broadcast %cst_72 : f32 to vector<8x128xf32>
    %234 = arith.subf %233, %232 : vector<8x128xf32>
    %235 = math.exp %234 : vector<8x128xf32>
    %cst_73 = arith.constant 1.000000e+00 : f32
    %236 = vector.broadcast %cst_73 : f32 to vector<8x128xf32>
    %237 = arith.addf %236, %235 : vector<8x128xf32>
    %238 = tpu.reciprocal %237 {approx = true} : vector<8x128xf32> -> vector<8x128xf32>
    %239 = vector.extract_strided_slice %231 {offsets = [0, 128], sizes = [8, 128], strides = [1, 1]} : vector<8x512xf32> to vector<8x128xf32>
    %cst_74 = arith.constant 0.000000e+00 : f32
    %240 = vector.broadcast %cst_74 : f32 to vector<8x128xf32>
    %241 = arith.subf %240, %239 : vector<8x128xf32>
    %242 = math.exp %241 : vector<8x128xf32>
    %cst_75 = arith.constant 1.000000e+00 : f32
    %243 = vector.broadcast %cst_75 : f32 to vector<8x128xf32>
    %244 = arith.addf %243, %242 : vector<8x128xf32>
    %245 = tpu.reciprocal %244 {approx = true} : vector<8x128xf32> -> vector<8x128xf32>
    %246 = vector.extract_strided_slice %231 {offsets = [0, 256], sizes = [8, 128], strides = [1, 1]} : vector<8x512xf32> to vector<8x128xf32>
    %247 = math.tanh %246 : vector<8x128xf32>
    %248 = vector.extract_strided_slice %231 {offsets = [0, 384], sizes = [8, 128], strides = [1, 1]} : vector<8x512xf32> to vector<8x128xf32>
    %cst_76 = arith.constant 0.000000e+00 : f32
    %249 = vector.broadcast %cst_76 : f32 to vector<8x128xf32>
    %250 = arith.subf %249, %248 : vector<8x128xf32>
    %251 = math.exp %250 : vector<8x128xf32>
    %cst_77 = arith.constant 1.000000e+00 : f32
    %252 = vector.broadcast %cst_77 : f32 to vector<8x128xf32>
    %253 = arith.addf %252, %251 : vector<8x128xf32>
    %254 = tpu.reciprocal %253 {approx = true} : vector<8x128xf32> -> vector<8x128xf32>
    %255 = arith.mulf %245, %222 : vector<8x128xf32>
    %256 = arith.mulf %238, %247 : vector<8x128xf32>
    %257 = arith.addf %255, %256 : vector<8x128xf32>
    %258 = math.tanh %257 : vector<8x128xf32>
    %259 = arith.mulf %254, %258 : vector<8x128xf32>
    %c7_i32 = arith.constant 7 : i32
    %c8_i32_78 = arith.constant 8 : i32
    %260 = arith.muli %c7_i32, %c8_i32_78 : i32
    %261 = tpu.assume_multiple %260, 8 : i32
    %262 = arith.index_cast %261 : i32 to index
    %c0_79 = arith.constant 0 : index
    %263 = vector.load %arg11[%262, %c0_79] : memref<64x512xf32, #tpu.memory_space<vmem>>, vector<8x512xf32>
    %264 = arith.truncf %259 : vector<8x128xf32> to vector<8x128xbf16>
    %cst_80 = arith.constant dense<0.000000e+00> : vector<8x512xf32>
    %265 = tpu.matmul %264, %12, %cst_80 {dimension_numbers = #tpu.dot_dimension_numbers<[1], [0], [0], [1], [0, 0, 1, 1], [], []>} : vector<8x128xbf16>, vector<128x512xbf16>, vector<8x512xf32> -> vector<8x512xf32>
    %266 = arith.addf %263, %265 : vector<8x512xf32>
    %267 = vector.extract_strided_slice %266 {offsets = [0, 0], sizes = [8, 128], strides = [1, 1]} : vector<8x512xf32> to vector<8x128xf32>
    %cst_81 = arith.constant 0.000000e+00 : f32
    %268 = vector.broadcast %cst_81 : f32 to vector<8x128xf32>
    %269 = arith.subf %268, %267 : vector<8x128xf32>
    %270 = math.exp %269 : vector<8x128xf32>
    %cst_82 = arith.constant 1.000000e+00 : f32
    %271 = vector.broadcast %cst_82 : f32 to vector<8x128xf32>
    %272 = arith.addf %271, %270 : vector<8x128xf32>
    %273 = tpu.reciprocal %272 {approx = true} : vector<8x128xf32> -> vector<8x128xf32>
    %274 = vector.extract_strided_slice %266 {offsets = [0, 128], sizes = [8, 128], strides = [1, 1]} : vector<8x512xf32> to vector<8x128xf32>
    %cst_83 = arith.constant 0.000000e+00 : f32
    %275 = vector.broadcast %cst_83 : f32 to vector<8x128xf32>
    %276 = arith.subf %275, %274 : vector<8x128xf32>
    %277 = math.exp %276 : vector<8x128xf32>
    %cst_84 = arith.constant 1.000000e+00 : f32
    %278 = vector.broadcast %cst_84 : f32 to vector<8x128xf32>
    %279 = arith.addf %278, %277 : vector<8x128xf32>
    %280 = tpu.reciprocal %279 {approx = true} : vector<8x128xf32> -> vector<8x128xf32>
    %281 = vector.extract_strided_slice %266 {offsets = [0, 256], sizes = [8, 128], strides = [1, 1]} : vector<8x512xf32> to vector<8x128xf32>
    %282 = math.tanh %281 : vector<8x128xf32>
    %283 = vector.extract_strided_slice %266 {offsets = [0, 384], sizes = [8, 128], strides = [1, 1]} : vector<8x512xf32> to vector<8x128xf32>
    %cst_85 = arith.constant 0.000000e+00 : f32
    %284 = vector.broadcast %cst_85 : f32 to vector<8x128xf32>
    %285 = arith.subf %284, %283 : vector<8x128xf32>
    %286 = math.exp %285 : vector<8x128xf32>
    %cst_86 = arith.constant 1.000000e+00 : f32
    %287 = vector.broadcast %cst_86 : f32 to vector<8x128xf32>
    %288 = arith.addf %287, %286 : vector<8x128xf32>
    %289 = tpu.reciprocal %288 {approx = true} : vector<8x128xf32> -> vector<8x128xf32>
    %290 = arith.mulf %280, %257 : vector<8x128xf32>
    %291 = arith.mulf %273, %282 : vector<8x128xf32>
    %292 = arith.addf %290, %291 : vector<8x128xf32>
    %293 = math.tanh %292 : vector<8x128xf32>
    %294 = arith.mulf %289, %293 : vector<8x128xf32>
    %c8_i32_87 = arith.constant 8 : i32
    %c0_88 = arith.constant 0 : index
    %c0_89 = arith.constant 0 : index
    %295 = vector.load %arg9[%c0_88, %c0_89] : memref<8x128xf32, #tpu.memory_space<vmem>>, vector<8x128xf32>
    tpu.vector_store %arg9[%c0_88, %c0_89], %294 {strides = array<i32>} : memref<8x128xf32, #tpu.memory_space<vmem>>, vector<8x128xf32>,
    %c0_90 = arith.constant 0 : index
    %c0_91 = arith.constant 0 : index
    %296 = vector.load %arg10[%c0_90, %c0_91] : memref<8x128xf32, #tpu.memory_space<vmem>>, vector<8x128xf32>
    tpu.vector_store %arg10[%c0_90, %c0_91], %292 {strides = array<i32>} : memref<8x128xf32, #tpu.memory_space<vmem>>, vector<8x128xf32>,
    %c0_i32_92 = arith.constant 0 : i32
    %297 = arith.cmpi eq, %arg1, %c0_i32_92 : i32
    %298 = arith.extui %297 : i1 to i32
    %c0_i32_93 = arith.constant 0 : i32
    %299 = arith.cmpi ne, %298, %c0_i32_93 : i32
    scf.if %299 {
      %c0_94 = arith.constant 0 : index
      %c0_95 = arith.constant 0 : index
      %300 = vector.load %arg6[%c0_94, %c0_95] : memref<1x128xf32, #tpu.memory_space<vmem>>, vector<1x128xf32>
      %301 = vector.broadcast %300 : vector<1x128xf32> to vector<8x128xf32>
      %302 = arith.mulf %294, %301 : vector<8x128xf32>
      %cst_96 = arith.constant dense<0.000000e+00> : vector<8xf32>
      %303 = vector.multi_reduction <add>, %302, %cst_96 [1] : vector<8x128xf32> to vector<8xf32>
      %304 = vector.shape_cast %303 : vector<8xf32> to vector<8x1xf32>
      %c0_97 = arith.constant 0 : index
      %c0_98 = arith.constant 0 : index
      %305 = vector.load %arg7[%c0_97, %c0_98] : memref<1x1xf32, #tpu.memory_space<vmem>>, vector<1x1xf32>
      %306 = vector.broadcast %305 : vector<1x1xf32> to vector<8x1xf32>
      %307 = arith.addf %304, %306 : vector<8x1xf32>
      %308 = arith.negf %307 : vector<8x1xf32>
      %309 = math.exp %308 : vector<8x1xf32>
      %cst_99 = arith.constant 1.000000e+00 : f32
      %310 = vector.broadcast %cst_99 : f32 to vector<8x1xf32>
      %311 = arith.addf %310, %309 : vector<8x1xf32>
      %312 = arith.divf %310, %311 : vector<8x1xf32>
      %313 = vector.shape_cast %312 : vector<8x1xf32> to vector<8x1xf32>
      %314 = vector.broadcast %313 : vector<8x1xf32> to vector<8x128xf32>
      %c0_100 = arith.constant 0 : index
      %c0_101 = arith.constant 0 : index
      %315 = vector.load %arg8[%c0_100, %c0_101] : memref<8x128xf32, #tpu.memory_space<vmem>>, vector<8x128xf32>
      tpu.vector_store %arg8[%c0_100, %c0_101], %314 {strides = array<i32>} : memref<8x128xf32, #tpu.memory_space<vmem>>, vector<8x128xf32>,
    } else {
    }
    return
  }
  func.func @transform_0(%arg0: i32, %arg1: i32) -> (i32, i32, i32) {
    %c0_i32 = arith.constant 0 : i32
    %c0_i32_0 = arith.constant 0 : i32
    return %arg1, %arg0, %c0_i32 : i32, i32, i32
  }
  func.func @transform_1(%arg0: i32, %arg1: i32) -> (i32, i32) {
    %c0_i32 = arith.constant 0 : i32
    %c0_i32_0 = arith.constant 0 : i32
    %c0_i32_1 = arith.constant 0 : i32
    return %c0_i32, %c0_i32_0 : i32, i32
  }
  func.func @transform_2(%arg0: i32, %arg1: i32) -> (i32, i32) {
    %c0_i32 = arith.constant 0 : i32
    %c0_i32_0 = arith.constant 0 : i32
    %c0_i32_1 = arith.constant 0 : i32
    return %c0_i32, %c0_i32_0 : i32, i32
  }
  func.func @transform_3(%arg0: i32, %arg1: i32) -> (i32, i32) {
    %c0_i32 = arith.constant 0 : i32
    %c0_i32_0 = arith.constant 0 : i32
    %c0_i32_1 = arith.constant 0 : i32
    return %c0_i32, %c0_i32_0 : i32, i32
  }
  func.func @transform_4(%arg0: i32, %arg1: i32) -> (i32, i32) {
    %c0_i32 = arith.constant 0 : i32
    %c0_i32_0 = arith.constant 0 : i32
    %c0_i32_1 = arith.constant 0 : i32
    return %c0_i32, %c0_i32_0 : i32, i32
  }
  func.func @transform_5(%arg0: i32, %arg1: i32) -> (i32, i32) {
    %c0_i32 = arith.constant 0 : i32
    %c0_i32_0 = arith.constant 0 : i32
    %c0_i32_1 = arith.constant 0 : i32
    return %c0_i32, %c0_i32_0 : i32, i32
  }
  func.func @transform_6(%arg0: i32, %arg1: i32) -> (i32, i32) {
    %c0_i32 = arith.constant 0 : i32
    %c0_i32_0 = arith.constant 0 : i32
    return %arg0, %c0_i32 : i32, i32
  }
}

</mosaic_0001>

<llo_original>
// kernel: sentiment_model_forward.1
$region0: #{sentiment_model_forward.1}
  #allocation0 [shape = 'u32[]', space=smem, size = 0x4, offset = 0x4, fixed_abs, tag = 'smem constant byte address 0x4 - core index']
  #allocation1 [shape = 'u32[72,128]{1,0:T(1,128)}', space=vmem, size = 0x9000, scoped, tag = 'internal scratch']
  #allocation2 [shape = 'f32[8,128]{1,0:T(8,128)}', space=vmem, size = 0x1000, scoped, tag = 'scratch operand']
  #allocation3 [shape = 'f32[8,128]{1,0:T(8,128)}', space=vmem, size = 0x1000, scoped, tag = 'scratch operand']
  #allocation4 [shape = 'f32[64,512]{1,0:T(8,128)}', space=vmem, size = 0x20000, scoped, tag = 'scratch operand']
  #allocation5 [shape = 'f32[1,1]{1,0:T(1,128)S(1)}', space=vmem, size = 0x200, scoped, tag = 'scoped memory for sentiment_model_forward.1']
  %s0 = inlined_call_operand.vmem [shape: f32[8,8,128], index: 0, kind: input, shape index: {}]
  %s1 = inlined_call_operand.vmem [shape: bf16[128,512], index: 1, kind: input, shape index: {}]
  %s2 = inlined_call_operand.vmem [shape: bf16[128,512], index: 2, kind: input, shape index: {}]
  %s3 = inlined_call_operand.vmem [shape: f32[1,512], index: 3, kind: input, shape index: {}]
  %s4 = inlined_call_operand.vmem [shape: f32[1,128], index: 4, kind: input, shape index: {}]
  %s5 = inlined_call_operand.<no memory space> [shape: f32[1,1], index: 5, kind: input, shape index: {}]
  %s6 = inlined_call_operand.vmem [shape: f32[8,128], index: 6, kind: output, shape index: {}]
  %s7 = sld [smem:[#allocation0]]
  $region42: #{sentiment_model_forward.1} parent=0
    _
  %s9 = ssub.s32 1, %s7
  %s10 = scalar_select 0, %s9, %s7
  %v11 = vstv %s5
  %12 = vst [vmem:[#allocation5] sm:$0x1] %v11
  // Predicated region
  $region2: #{sentiment_model_forward.1} parent=0 // pred_check
    _
  $region3: #{sentiment_model_forward.1} parent=0 // pred_check_branch
    %14 = sbr.rel (0) target = $region5
  $region4: #{sentiment_model_forward.1} parent=0 // pred_region
    _
  $region5: #{sentiment_model_forward.1} parent=0 // pred_fallthru
    _
  // Predicated region
  $region6: #{sentiment_model_forward.1} parent=0 // pred_check
    _
  $region7: #{sentiment_model_forward.1} parent=0 // pred_check_branch
    %16 = sbr.rel (0) target = $region9
  $region8: #{sentiment_model_forward.1} parent=0 // pred_region
    _
  $region9: #{sentiment_model_forward.1} parent=0 // pred_fallthru
    _
  // Predicated region
  $region10: #{sentiment_model_forward.1} parent=0 // pred_check
    _
  $region11: #{sentiment_model_forward.1} parent=0 // pred_check_branch
    %18 = sbr.rel (0) target = $region13
  $region12: #{sentiment_model_forward.1} parent=0 // pred_region
    _
  $region13: #{sentiment_model_forward.1} parent=0 // pred_fallthru
    _
  // Predicated region
  $region14: #{sentiment_model_forward.1} parent=0 // pred_check
    _
  $region15: #{sentiment_model_forward.1} parent=0 // pred_check_branch
    %20 = sbr.rel (0) target = $region17
  $region16: #{sentiment_model_forward.1} parent=0 // pred_region
    _
  $region17: #{sentiment_model_forward.1} parent=0 // pred_fallthru
    _
  // Predicated region
  $region18: #{sentiment_model_forward.1} parent=0 // pred_check
    _
  $region19: #{sentiment_model_forward.1} parent=0 // pred_check_branch
    %22 = sbr.rel (0) target = $region21
  $region20: #{sentiment_model_forward.1} parent=0 // pred_region
    _
  $region21: #{sentiment_model_forward.1} parent=0 // pred_fallthru
    _
  // Predicated region
  $region22: #{sentiment_model_forward.1} parent=0 // pred_check
    _
  $region23: #{sentiment_model_forward.1} parent=0 // pred_check_branch
    %24 = sbr.rel (0) target = $region25
  $region24: #{sentiment_model_forward.1} parent=0 // pred_region
    _
  $region25: #{sentiment_model_forward.1} parent=0 // pred_fallthru
    _
  %p25 = scmp.eq.s32.totalorder 0, 0
  // Predicated region
  $region26: #{sentiment_model_forward.1} parent=0 // pred_check
    %p26 = pneg %p25
  $region27: #{sentiment_model_forward.1} parent=0 // pred_check_branch
    %28 = sbr.rel (%p26) target = $region29
  $region28: #{sentiment_model_forward.1} parent=0 // pred_region
    %29 = vst [vmem:[#allocation2] sm:$0xff] 0.0
    %30 = vst [vmem:[#allocation3] sm:$0xff] 0.0
  $region29: #{sentiment_model_forward.1} parent=0 // pred_fallthru
    _
  %v31 = vld [vmem:[%s0] sm:$0xff]
  %v32 = vld [vmem:[%s0 + $0x8] sm:$0xff]
  %v33 = vld [vmem:[%s0 + $0x10] sm:$0xff]
  %v34 = vld [vmem:[%s0 + $0x18] sm:$0xff]
  %v35 = vld [vmem:[%s0 + $0x20] sm:$0xff]
  %v36 = vld [vmem:[%s0 + $0x28] sm:$0xff]
  %v37 = vld [vmem:[%s0 + $0x30] sm:$0xff]
  %v38 = vld [vmem:[%s0 + $0x38] sm:$0xff]
  %v39 = vpack.c.bf16 %v32, %v31
  %v40 = vpack.c.bf16 %v34, %v33
  %v41 = vpack.c.bf16 %v36, %v35
  %v42 = vpack.c.bf16 %v38, %v37
  %v43 = vld [vmem:[%s1] sm:$0xff]
  %v44 = vld [vmem:[%s1 + $0x8] sm:$0xff]
  %v45 = vld [vmem:[%s1 + $0x10] sm:$0xff]
  %v46 = vld [vmem:[%s1 + $0x18] sm:$0xff]
  %v47 = vld [vmem:[%s1 + $0x20] sm:$0xff]
  %v48 = vld [vmem:[%s1 + $0x28] sm:$0xff]
  %v49 = vld [vmem:[%s1 + $0x30] sm:$0xff]
  %v50 = vld [vmem:[%s1 + $0x38] sm:$0xff]
  %v51 = vld [vmem:[%s1 + $0x40] sm:$0xff]
  %v52 = vld [vmem:[%s1 + $0x48] sm:$0xff]
  %v53 = vld [vmem:[%s1 + $0x50] sm:$0xff]
  %v54 = vld [vmem:[%s1 + $0x58] sm:$0xff]
  %v55 = vld [vmem:[%s1 + $0x60] sm:$0xff]
  %v56 = vld [vmem:[%s1 + $0x68] sm:$0xff]
  %v57 = vld [vmem:[%s1 + $0x70] sm:$0xff]
  %v58 = vld [vmem:[%s1 + $0x78] sm:$0xff]
  %v59 = vld [vmem:[%s1 + $0x80] sm:$0xff]
  %v60 = vld [vmem:[%s1 + $0x88] sm:$0xff]
  %v61 = vld [vmem:[%s1 + $0x90] sm:$0xff]
  %v62 = vld [vmem:[%s1 + $0x98] sm:$0xff]
  %v63 = vld [vmem:[%s1 + $0xa0] sm:$0xff]
  %v64 = vld [vmem:[%s1 + $0xa8] sm:$0xff]
  %v65 = vld [vmem:[%s1 + $0xb0] sm:$0xff]
  %v66 = vld [vmem:[%s1 + $0xb8] sm:$0xff]
  %v67 = vld [vmem:[%s1 + $0xc0] sm:$0xff]
  %v68 = vld [vmem:[%s1 + $0xc8] sm:$0xff]
  %v69 = vld [vmem:[%s1 + $0xd0] sm:$0xff]
  %v70 = vld [vmem:[%s1 + $0xd8] sm:$0xff]
  %v71 = vld [vmem:[%s1 + $0xe0] sm:$0xff]
  %v72 = vld [vmem:[%s1 + $0xe8] sm:$0xff]
  %v73 = vld [vmem:[%s1 + $0xf0] sm:$0xff]
  %v74 = vld [vmem:[%s1 + $0xf8] sm:$0xff]
  %v75 = vld [vmem:[%s3] sm:$0xf]
  %v77 = vperm.slane %v75, 0
  %v78 = vperm.slane %v75, 1
  %v79 = vperm.slane %v75, 2
  %v80 = vperm.slane %v75, 3
  %v117 = vunpack.c.l.b16 %v43
  %v118 = vunpack.c.h.b16 %v43
  %v119 = vunpack.c.l.b16 %v44
  %v120 = vunpack.c.h.b16 %v44
  %v121 = vunpack.c.l.b16 %v45
  %v122 = vunpack.c.h.b16 %v45
  %v123 = vunpack.c.l.b16 %v46
  %v124 = vunpack.c.h.b16 %v46
  %v125 = vunpack.c.l.b16 %v47
  %v126 = vunpack.c.h.b16 %v47
  %v127 = vunpack.c.l.b16 %v48
  %v128 = vunpack.c.h.b16 %v48
  %v129 = vunpack.c.l.b16 %v49
  %v130 = vunpack.c.h.b16 %v49
  %v131 = vunpack.c.l.b16 %v50
  %v132 = vunpack.c.h.b16 %v50
  %v133 = vunpack.c.l.b16 %v51
  %v134 = vunpack.c.h.b16 %v51
  %v135 = vunpack.c.l.b16 %v52
  %v136 = vunpack.c.h.b16 %v52
  %v137 = vunpack.c.l.b16 %v53
  %v138 = vunpack.c.h.b16 %v53
  %v139 = vunpack.c.l.b16 %v54
  %v140 = vunpack.c.h.b16 %v54
  %v141 = vunpack.c.l.b16 %v55
  %v142 = vunpack.c.h.b16 %v55
  %v143 = vunpack.c.l.b16 %v56
  %v144 = vunpack.c.h.b16 %v56
  %v145 = vunpack.c.l.b16 %v57
  %v146 = vunpack.c.h.b16 %v57
  %v147 = vunpack.c.l.b16 %v58
  %v148 = vunpack.c.h.b16 %v58
  %v149 = vunpack.c.l.b16 %v59
  %v150 = vunpack.c.h.b16 %v59
  %v151 = vunpack.c.l.b16 %v60
  %v152 = vunpack.c.h.b16 %v60
  %v153 = vunpack.c.l.b16 %v61
  %v154 = vunpack.c.h.b16 %v61
  %v155 = vunpack.c.l.b16 %v62
  %v156 = vunpack.c.h.b16 %v62
  %v157 = vunpack.c.l.b16 %v63
  %v158 = vunpack.c.h.b16 %v63
  %v159 = vunpack.c.l.b16 %v64
  %v160 = vunpack.c.h.b16 %v64
  %v161 = vunpack.c.l.b16 %v65
  %v162 = vunpack.c.h.b16 %v65
  %v163 = vunpack.c.l.b16 %v66
  %v164 = vunpack.c.h.b16 %v66
  %v165 = vunpack.c.l.b16 %v67
  %v166 = vunpack.c.h.b16 %v67
  %v167 = vunpack.c.l.b16 %v68
  %v168 = vunpack.c.h.b16 %v68
  %v169 = vunpack.c.l.b16 %v69
  %v170 = vunpack.c.h.b16 %v69
  %v171 = vunpack.c.l.b16 %v70
  %v172 = vunpack.c.h.b16 %v70
  %v173 = vunpack.c.l.b16 %v71
  %v174 = vunpack.c.h.b16 %v71
  %v175 = vunpack.c.l.b16 %v72
  %v176 = vunpack.c.h.b16 %v72
  %v177 = vunpack.c.l.b16 %v73
  %v178 = vunpack.c.h.b16 %v73
  %v179 = vunpack.c.l.b16 %v74
  %v180 = vunpack.c.h.b16 %v74
  %v181 = vpack.c.b16 %v121, %v117
  %v182 = vpack.c.b16 %v122, %v118
  %v183 = vpack.c.b16 %v123, %v119
  %v184 = vpack.c.b16 %v124, %v120
  %v185 = vpack.c.b16 %v129, %v125
  %v186 = vpack.c.b16 %v130, %v126
  %v187 = vpack.c.b16 %v131, %v127
  %v188 = vpack.c.b16 %v132, %v128
  %v189 = vpack.c.b16 %v137, %v133
  %v190 = vpack.c.b16 %v138, %v134
  %v191 = vpack.c.b16 %v139, %v135
  %v192 = vpack.c.b16 %v140, %v136
  %v193 = vpack.c.b16 %v145, %v141
  %v194 = vpack.c.b16 %v146, %v142
  %v195 = vpack.c.b16 %v147, %v143
  %v196 = vpack.c.b16 %v148, %v144
  %v197 = vpack.c.b16 %v153, %v149
  %v198 = vpack.c.b16 %v154, %v150
  %v199 = vpack.c.b16 %v155, %v151
  %v200 = vpack.c.b16 %v156, %v152
  %v201 = vpack.c.b16 %v161, %v157
  %v202 = vpack.c.b16 %v162, %v158
  %v203 = vpack.c.b16 %v163, %v159
  %v204 = vpack.c.b16 %v164, %v160
  %v205 = vpack.c.b16 %v169, %v165
  %v206 = vpack.c.b16 %v170, %v166
  %v207 = vpack.c.b16 %v171, %v167
  %v208 = vpack.c.b16 %v172, %v168
  %v209 = vpack.c.b16 %v177, %v173
  %v210 = vpack.c.b16 %v178, %v174
  %v211 = vpack.c.b16 %v179, %v175
  %v212 = vpack.c.b16 %v180, %v176
  %245 = vmatpush.bf16.msra.mxu0 %v209
  %246 = vmatpush.bf16.msra.mxu0 %v205
  %247 = vmatpush.bf16.msra.mxu0 %v201
  %248 = vmatpush.bf16.msra.mxu0 %v197
  %249 = vmatpush.bf16.msra.mxu0 %v193
  %250 = vmatpush.bf16.msra.mxu0 %v189
  %251 = vmatpush.bf16.msra.mxu0 %v185
  %252 = vmatpush.bf16.msra.mxu0 %v181
  %253 = vmatmul.bf16.gmra.mxu0 %v39
  %v254 = vpop.f32.mrf.mxu0
  %v255 = vadd.f32 %v77, %v254
  %v256 = vpop.f32.mrf.mxu0
  %v257 = vadd.f32 %v77, %v256
  %258 = vmatmul.bf16.gmra.mxu0 %v40
  %v259 = vpop.f32.mrf.mxu0
  %v260 = vadd.f32 %v77, %v259
  %v261 = vpop.f32.mrf.mxu0
  %v262 = vadd.f32 %v77, %v261
  %263 = vmatmul.bf16.gmra.mxu0 %v41
  %v264 = vpop.f32.mrf.mxu0
  %v265 = vadd.f32 %v77, %v264
  %v266 = vpop.f32.mrf.mxu0
  %v267 = vadd.f32 %v77, %v266
  %268 = vmatmul.bf16.gmra.mxu0 %v42
  %v269 = vpop.f32.mrf.mxu0
  %v270 = vadd.f32 %v77, %v269
  %v271 = vpop.f32.mrf.mxu0
  %v272 = vadd.f32 %v77, %v271
  %273 = vdwg.mxu0
  %274 = vmatpush.bf16.msra.mxu0 %v210
  %275 = vmatpush.bf16.msra.mxu0 %v206
  %276 = vmatpush.bf16.msra.mxu0 %v202
  %277 = vmatpush.bf16.msra.mxu0 %v198
  %278 = vmatpush.bf16.msra.mxu0 %v194
  %279 = vmatpush.bf16.msra.mxu0 %v190
  %280 = vmatpush.bf16.msra.mxu0 %v186
  %281 = vmatpush.bf16.msra.mxu0 %v182
  %282 = vmatmul.bf16.gmra.mxu0 %v39
  %v283 = vpop.f32.mrf.mxu0
  %v284 = vadd.f32 %v78, %v283
  %v285 = vpop.f32.mrf.mxu0
  %v286 = vadd.f32 %v78, %v285
  %287 = vmatmul.bf16.gmra.mxu0 %v40
  %v288 = vpop.f32.mrf.mxu0
  %v289 = vadd.f32 %v78, %v288
  %v290 = vpop.f32.mrf.mxu0
  %v291 = vadd.f32 %v78, %v290
  %292 = vmatmul.bf16.gmra.mxu0 %v41
  %v293 = vpop.f32.mrf.mxu0
  %v294 = vadd.f32 %v78, %v293
  %v295 = vpop.f32.mrf.mxu0
  %v296 = vadd.f32 %v78, %v295
  %297 = vmatmul.bf16.gmra.mxu0 %v42
  %v298 = vpop.f32.mrf.mxu0
  %v299 = vadd.f32 %v78, %v298
  %v300 = vpop.f32.mrf.mxu0
  %v301 = vadd.f32 %v78, %v300
  %302 = vdwg.mxu0
  %303 = vmatpush.bf16.msra.mxu0 %v211
  %304 = vmatpush.bf16.msra.mxu0 %v207
  %305 = vmatpush.bf16.msra.mxu0 %v203
  %306 = vmatpush.bf16.msra.mxu0 %v199
  %307 = vmatpush.bf16.msra.mxu0 %v195
  %308 = vmatpush.bf16.msra.mxu0 %v191
  %309 = vmatpush.bf16.msra.mxu0 %v187
  %310 = vmatpush.bf16.msra.mxu0 %v183
  %311 = vmatmul.bf16.gmra.mxu0 %v39
  %v312 = vpop.f32.mrf.mxu0
  %v313 = vadd.f32 %v79, %v312
  %v314 = vpop.f32.mrf.mxu0
  %v315 = vadd.f32 %v79, %v314
  %316 = vmatmul.bf16.gmra.mxu0 %v40
  %v317 = vpop.f32.mrf.mxu0
  %v318 = vadd.f32 %v79, %v317
  %v319 = vpop.f32.mrf.mxu0
  %v320 = vadd.f32 %v79, %v319
  %321 = vmatmul.bf16.gmra.mxu0 %v41
  %v322 = vpop.f32.mrf.mxu0
  %v323 = vadd.f32 %v79, %v322
  %v324 = vpop.f32.mrf.mxu0
  %v325 = vadd.f32 %v79, %v324
  %326 = vmatmul.bf16.gmra.mxu0 %v42
  %v327 = vpop.f32.mrf.mxu0
  %v328 = vadd.f32 %v79, %v327
  %v329 = vpop.f32.mrf.mxu0
  %v330 = vadd.f32 %v79, %v329
  %331 = vdwg.mxu0
  %332 = vmatpush.bf16.msra.mxu0 %v212
  %333 = vmatpush.bf16.msra.mxu0 %v208
  %334 = vmatpush.bf16.msra.mxu0 %v204
  %335 = vmatpush.bf16.msra.mxu0 %v200
  %336 = vmatpush.bf16.msra.mxu0 %v196
  %337 = vmatpush.bf16.msra.mxu0 %v192
  %338 = vmatpush.bf16.msra.mxu0 %v188
  %339 = vmatpush.bf16.msra.mxu0 %v184
  %340 = vmatmul.bf16.gmra.mxu0 %v39
  %v341 = vpop.f32.mrf.mxu0
  %v342 = vadd.f32 %v80, %v341
  %v343 = vpop.f32.mrf.mxu0
  %v344 = vadd.f32 %v80, %v343
  %345 = vmatmul.bf16.gmra.mxu0 %v40
  %v346 = vpop.f32.mrf.mxu0
  %v347 = vadd.f32 %v80, %v346
  %v348 = vpop.f32.mrf.mxu0
  %v349 = vadd.f32 %v80, %v348
  %350 = vmatmul.bf16.gmra.mxu0 %v41
  %v351 = vpop.f32.mrf.mxu0
  %v352 = vadd.f32 %v80, %v351
  %v353 = vpop.f32.mrf.mxu0
  %v354 = vadd.f32 %v80, %v353
  %355 = vmatmul.bf16.gmra.mxu0 %v42
  %v356 = vpop.f32.mrf.mxu0
  %v357 = vadd.f32 %v80, %v356
  %v358 = vpop.f32.mrf.mxu0
  %v359 = vadd.f32 %v80, %v358
  %360 = vdwg.mxu0
  %361 = vst [vmem:[#allocation4] sm:$0xff] %v255
  %362 = vst [vmem:[#allocation4 + $0x8] sm:$0xff] %v284
  %363 = vst [vmem:[#allocation4 + $0x10] sm:$0xff] %v313
  %364 = vst [vmem:[#allocation4 + $0x18] sm:$0xff] %v342
  %365 = vst [vmem:[#allocation4 + $0x20] sm:$0xff] %v257
  %366 = vst [vmem:[#allocation4 + $0x28] sm:$0xff] %v286
  %367 = vst [vmem:[#allocation4 + $0x30] sm:$0xff] %v315
  %368 = vst [vmem:[#allocation4 + $0x38] sm:$0xff] %v344
  %369 = vst [vmem:[#allocation4 + $0x40] sm:$0xff] %v260
  %370 = vst [vmem:[#allocation4 + $0x48] sm:$0xff] %v289
  %371 = vst [vmem:[#allocation4 + $0x50] sm:$0xff] %v318
  %372 = vst [vmem:[#allocation4 + $0x58] sm:$0xff] %v347
  %373 = vst [vmem:[#allocation4 + $0x60] sm:$0xff] %v262
  %374 = vst [vmem:[#allocation4 + $0x68] sm:$0xff] %v291
  %375 = vst [vmem:[#allocation4 + $0x70] sm:$0xff] %v320
  %376 = vst [vmem:[#allocation4 + $0x78] sm:$0xff] %v349
  %377 = vst [vmem:[#allocation4 + $0x80] sm:$0xff] %v265
  %378 = vst [vmem:[#allocation4 + $0x88] sm:$0xff] %v294
  %379 = vst [vmem:[#allocation4 + $0x90] sm:$0xff] %v323
  %380 = vst [vmem:[#allocation4 + $0x98] sm:$0xff] %v352
  %381 = vst [vmem:[#allocation4 + $0xa0] sm:$0xff] %v267
  %382 = vst [vmem:[#allocation4 + $0xa8] sm:$0xff] %v296
  %383 = vst [vmem:[#allocation4 + $0xb0] sm:$0xff] %v325
  %384 = vst [vmem:[#allocation4 + $0xb8] sm:$0xff] %v354
  %385 = vst [vmem:[#allocation4 + $0xc0] sm:$0xff] %v270
  %386 = vst [vmem:[#allocation4 + $0xc8] sm:$0xff] %v299
  %387 = vst [vmem:[#allocation4 + $0xd0] sm:$0xff] %v328
  %388 = vst [vmem:[#allocation4 + $0xd8] sm:$0xff] %v357
  %389 = vst [vmem:[#allocation4 + $0xe0] sm:$0xff] %v272
  %390 = vst [vmem:[#allocation4 + $0xe8] sm:$0xff] %v301
  %391 = vst [vmem:[#allocation4 + $0xf0] sm:$0xff] %v330
  %392 = vst [vmem:[#allocation4 + $0xf8] sm:$0xff] %v359
  %v393 = vld [vmem:[%s2] sm:$0xff]
  %v394 = vld [vmem:[%s2 + $0x8] sm:$0xff]
  %v395 = vld [vmem:[%s2 + $0x10] sm:$0xff]
  %v396 = vld [vmem:[%s2 + $0x18] sm:$0xff]
  %v397 = vld [vmem:[%s2 + $0x20] sm:$0xff]
  %v398 = vld [vmem:[%s2 + $0x28] sm:$0xff]
  %v399 = vld [vmem:[%s2 + $0x30] sm:$0xff]
  %v400 = vld [vmem:[%s2 + $0x38] sm:$0xff]
  %v401 = vld [vmem:[%s2 + $0x40] sm:$0xff]
  %v402 = vld [vmem:[%s2 + $0x48] sm:$0xff]
  %v403 = vld [vmem:[%s2 + $0x50] sm:$0xff]
  %v404 = vld [vmem:[%s2 + $0x58] sm:$0xff]
  %v405 = vld [vmem:[%s2 + $0x60] sm:$0xff]
  %v406 = vld [vmem:[%s2 + $0x68] sm:$0xff]
  %v407 = vld [vmem:[%s2 + $0x70] sm:$0xff]
  %v408 = vld [vmem:[%s2 + $0x78] sm:$0xff]
  %v409 = vld [vmem:[%s2 + $0x80] sm:$0xff]
  %v410 = vld [vmem:[%s2 + $0x88] sm:$0xff]
  %v411 = vld [vmem:[%s2 + $0x90] sm:$0xff]
  %v412 = vld [vmem:[%s2 + $0x98] sm:$0xff]
  %v413 = vld [vmem:[%s2 + $0xa0] sm:$0xff]
  %v414 = vld [vmem:[%s2 + $0xa8] sm:$0xff]
  %v415 = vld [vmem:[%s2 + $0xb0] sm:$0xff]
  %v416 = vld [vmem:[%s2 + $0xb8] sm:$0xff]
  %v417 = vld [vmem:[%s2 + $0xc0] sm:$0xff]
  %v418 = vld [vmem:[%s2 + $0xc8] sm:$0xff]
  %v419 = vld [vmem:[%s2 + $0xd0] sm:$0xff]
  %v420 = vld [vmem:[%s2 + $0xd8] sm:$0xff]
  %v421 = vld [vmem:[%s2 + $0xe0] sm:$0xff]
  %v422 = vld [vmem:[%s2 + $0xe8] sm:$0xff]
  %v423 = vld [vmem:[%s2 + $0xf0] sm:$0xff]
  %v424 = vld [vmem:[%s2 + $0xf8] sm:$0xff]
  %v425 = vld [vmem:[#allocation2] sm:$0xff]
  %v426 = vld [vmem:[#allocation3] sm:$0xff]
  %s427 = smul.u32 0, 4
  %s428 = smul.addr %s427, 8
  %s429 = scalar_lea.vmem [#allocation4], %s428
  %v430 = vld [vmem:[%s429] sm:$0xff]
  %v431 = vld [vmem:[%s429 + $0x8] sm:$0xff]
  %v432 = vld [vmem:[%s429 + $0x10] sm:$0xff]
  %v433 = vld [vmem:[%s429 + $0x18] sm:$0xff]
  %v434 = vpack.c.bf16 %v425, %v425
  %v467 = vunpack.c.l.b16 %v393
  %v468 = vunpack.c.h.b16 %v393
  %v469 = vunpack.c.l.b16 %v394
  %v470 = vunpack.c.h.b16 %v394
  %v471 = vunpack.c.l.b16 %v395
  %v472 = vunpack.c.h.b16 %v395
  %v473 = vunpack.c.l.b16 %v396
  %v474 = vunpack.c.h.b16 %v396
  %v475 = vunpack.c.l.b16 %v397
  %v476 = vunpack.c.h.b16 %v397
  %v477 = vunpack.c.l.b16 %v398
  %v478 = vunpack.c.h.b16 %v398
  %v479 = vunpack.c.l.b16 %v399
  %v480 = vunpack.c.h.b16 %v399
  %v481 = vunpack.c.l.b16 %v400
  %v482 = vunpack.c.h.b16 %v400
  %v483 = vunpack.c.l.b16 %v401
  %v484 = vunpack.c.h.b16 %v401
  %v485 = vunpack.c.l.b16 %v402
  %v486 = vunpack.c.h.b16 %v402
  %v487 = vunpack.c.l.b16 %v403
  %v488 = vunpack.c.h.b16 %v403
  %v489 = vunpack.c.l.b16 %v404
  %v490 = vunpack.c.h.b16 %v404
  %v491 = vunpack.c.l.b16 %v405
  %v492 = vunpack.c.h.b16 %v405
  %v493 = vunpack.c.l.b16 %v406
  %v494 = vunpack.c.h.b16 %v406
  %v495 = vunpack.c.l.b16 %v407
  %v496 = vunpack.c.h.b16 %v407
  %v497 = vunpack.c.l.b16 %v408
  %v498 = vunpack.c.h.b16 %v408
  %v499 = vunpack.c.l.b16 %v409
  %v500 = vunpack.c.h.b16 %v409
  %v501 = vunpack.c.l.b16 %v410
  %v502 = vunpack.c.h.b16 %v410
  %v503 = vunpack.c.l.b16 %v411
  %v504 = vunpack.c.h.b16 %v411
  %v505 = vunpack.c.l.b16 %v412
  %v506 = vunpack.c.h.b16 %v412
  %v507 = vunpack.c.l.b16 %v413
  %v508 = vunpack.c.h.b16 %v413
  %v509 = vunpack.c.l.b16 %v414
  %v510 = vunpack.c.h.b16 %v414
  %v511 = vunpack.c.l.b16 %v415
  %v512 = vunpack.c.h.b16 %v415
  %v513 = vunpack.c.l.b16 %v416
  %v514 = vunpack.c.h.b16 %v416
  %v515 = vunpack.c.l.b16 %v417
  %v516 = vunpack.c.h.b16 %v417
  %v517 = vunpack.c.l.b16 %v418
  %v518 = vunpack.c.h.b16 %v418
  %v519 = vunpack.c.l.b16 %v419
  %v520 = vunpack.c.h.b16 %v419
  %v521 = vunpack.c.l.b16 %v420
  %v522 = vunpack.c.h.b16 %v420
  %v523 = vunpack.c.l.b16 %v421
  %v524 = vunpack.c.h.b16 %v421
  %v525 = vunpack.c.l.b16 %v422
  %v526 = vunpack.c.h.b16 %v422
  %v527 = vunpack.c.l.b16 %v423
  %v528 = vunpack.c.h.b16 %v423
  %v529 = vunpack.c.l.b16 %v424
  %v530 = vunpack.c.h.b16 %v424
  %v531 = vpack.c.b16 %v471, %v467
  %v532 = vpack.c.b16 %v472, %v468
  %v533 = vpack.c.b16 %v473, %v469
  %v534 = vpack.c.b16 %v474, %v470
  %v535 = vpack.c.b16 %v479, %v475
  %v536 = vpack.c.b16 %v480, %v476
  %v537 = vpack.c.b16 %v481, %v477
  %v538 = vpack.c.b16 %v482, %v478
  %v539 = vpack.c.b16 %v487, %v483
  %v540 = vpack.c.b16 %v488, %v484
  %v541 = vpack.c.b16 %v489, %v485
  %v542 = vpack.c.b16 %v490, %v486
  %v543 = vpack.c.b16 %v495, %v491
  %v544 = vpack.c.b16 %v496, %v492
  %v545 = vpack.c.b16 %v497, %v493
  %v546 = vpack.c.b16 %v498, %v494
  %v547 = vpack.c.b16 %v503, %v499
  %v548 = vpack.c.b16 %v504, %v500
  %v549 = vpack.c.b16 %v505, %v501
  %v550 = vpack.c.b16 %v506, %v502
  %v551 = vpack.c.b16 %v511, %v507
  %v552 = vpack.c.b16 %v512, %v508
  %v553 = vpack.c.b16 %v513, %v509
  %v554 = vpack.c.b16 %v514, %v510
  %v555 = vpack.c.b16 %v519, %v515
  %v556 = vpack.c.b16 %v520, %v516
  %v557 = vpack.c.b16 %v521, %v517
  %v558 = vpack.c.b16 %v522, %v518
  %v559 = vpack.c.b16 %v527, %v523
  %v560 = vpack.c.b16 %v528, %v524
  %v561 = vpack.c.b16 %v529, %v525
  %v562 = vpack.c.b16 %v530, %v526
  %595 = vmatpush.bf16.msra.mxu0 %v559
  %596 = vmatpush.bf16.msra.mxu0 %v555
  %597 = vmatpush.bf16.msra.mxu0 %v551
  %598 = vmatpush.bf16.msra.mxu0 %v547
  %599 = vmatpush.bf16.msra.mxu0 %v543
  %600 = vmatpush.bf16.msra.mxu0 %v539
  %601 = vmatpush.bf16.msra.mxu0 %v535
  %602 = vmatpush.bf16.msra.mxu0 %v531
  %603 = vmatmul.bf16.gmra.mxu0 %v434
  %v604 = vpop.f32.mrf.mxu0
  %v605 = vadd.f32 0.0, %v604
  %v606 = vpop.f32.mrf.mxu0
  %607 = vdwg.mxu0
  %608 = vmatpush.bf16.msra.mxu0 %v560
  %609 = vmatpush.bf16.msra.mxu0 %v556
  %610 = vmatpush.bf16.msra.mxu0 %v552
  %611 = vmatpush.bf16.msra.mxu0 %v548
  %612 = vmatpush.bf16.msra.mxu0 %v544
  %613 = vmatpush.bf16.msra.mxu0 %v540
  %614 = vmatpush.bf16.msra.mxu0 %v536
  %615 = vmatpush.bf16.msra.mxu0 %v532
  %616 = vmatmul.bf16.gmra.mxu0 %v434
  %v617 = vpop.f32.mrf.mxu0
  %v618 = vadd.f32 0.0, %v617
  %v619 = vpop.f32.mrf.mxu0
  %620 = vdwg.mxu0
  %621 = vmatpush.bf16.msra.mxu0 %v561
  %622 = vmatpush.bf16.msra.mxu0 %v557
  %623 = vmatpush.bf16.msra.mxu0 %v553
  %624 = vmatpush.bf16.msra.mxu0 %v549
  %625 = vmatpush.bf16.msra.mxu0 %v545
  %626 = vmatpush.bf16.msra.mxu0 %v541
  %627 = vmatpush.bf16.msra.mxu0 %v537
  %628 = vmatpush.bf16.msra.mxu0 %v533
  %629 = vmatmul.bf16.gmra.mxu0 %v434
  %v630 = vpop.f32.mrf.mxu0
  %v631 = vadd.f32 0.0, %v630
  %v632 = vpop.f32.mrf.mxu0
  %633 = vdwg.mxu0
  %634 = vmatpush.bf16.msra.mxu0 %v562
  %635 = vmatpush.bf16.msra.mxu0 %v558
  %636 = vmatpush.bf16.msra.mxu0 %v554
  %637 = vmatpush.bf16.msra.mxu0 %v550
  %638 = vmatpush.bf16.msra.mxu0 %v546
  %639 = vmatpush.bf16.msra.mxu0 %v542
  %640 = vmatpush.bf16.msra.mxu0 %v538
  %641 = vmatpush.bf16.msra.mxu0 %v534
  %642 = vmatmul.bf16.gmra.mxu0 %v434
  %v643 = vpop.f32.mrf.mxu0
  %v644 = vadd.f32 0.0, %v643
  %v645 = vpop.f32.mrf.mxu0
  %646 = vdwg.mxu0
  %v647 = vadd.f32 %v430, %v605
  %v648 = vadd.f32 %v431, %v618
  %v649 = vadd.f32 %v432, %v631
  %v650 = vadd.f32 %v433, %v644
  %v651 = vsub.f32 0.0, %v647
  %v652 = vmul.f32 %v651, 1.442695
  %v653 = vpow.pop %v652
  %v654 = vadd.f32 %v653, 1.0
  %v655 = vrcp.pop %v654
  %v656 = vsub.f32 0.0, %v648
  %v657 = vmul.f32 %v656, 1.442695
  %v658 = vpow.pop %v657
  %v659 = vadd.f32 %v658, 1.0
  %v660 = vrcp.pop %v659
  %v661 = vtanh.pop %v649
  %v662 = vsub.f32 0.0, %v650
  %v663 = vmul.f32 %v662, 1.442695
  %v664 = vpow.pop %v663
  %v665 = vadd.f32 %v664, 1.0
  %v666 = vrcp.pop %v665
  %v667 = vmul.f32 %v660, %v426
  %v668 = vmul.f32 %v655, %v661
  %v669 = vadd.f32 %v667, %v668
  %v670 = vtanh.pop %v669
  %v671 = vmul.f32 %v666, %v670
  %s672 = smul.u32 1, 4
  %s673 = smul.addr %s672, 8
  %s674 = scalar_lea.vmem [#allocation4], %s673
  %v675 = vld [vmem:[%s674] sm:$0xff]
  %v676 = vld [vmem:[%s674 + $0x8] sm:$0xff]
  %v677 = vld [vmem:[%s674 + $0x10] sm:$0xff]
  %v678 = vld [vmem:[%s674 + $0x18] sm:$0xff]
  %v679 = vpack.c.bf16 %v671, %v671
  %680 = vmatpush.bf16.msra.mxu0 %v559
  %681 = vmatpush.bf16.msra.mxu0 %v555
  %682 = vmatpush.bf16.msra.mxu0 %v551
  %683 = vmatpush.bf16.msra.mxu0 %v547
  %684 = vmatpush.bf16.msra.mxu0 %v543
  %685 = vmatpush.bf16.msra.mxu0 %v539
  %686 = vmatpush.bf16.msra.mxu0 %v535
  %687 = vmatpush.bf16.msra.mxu0 %v531
  %688 = vmatmul.bf16.gmra.mxu0 %v679
  %v689 = vpop.f32.mrf.mxu0
  %v690 = vadd.f32 0.0, %v689
  %v691 = vpop.f32.mrf.mxu0
  %692 = vdwg.mxu0
  %693 = vmatpush.bf16.msra.mxu0 %v560
  %694 = vmatpush.bf16.msra.mxu0 %v556
  %695 = vmatpush.bf16.msra.mxu0 %v552
  %696 = vmatpush.bf16.msra.mxu0 %v548
  %697 = vmatpush.bf16.msra.mxu0 %v544
  %698 = vmatpush.bf16.msra.mxu0 %v540
  %699 = vmatpush.bf16.msra.mxu0 %v536
  %700 = vmatpush.bf16.msra.mxu0 %v532
  %701 = vmatmul.bf16.gmra.mxu0 %v679
  %v702 = vpop.f32.mrf.mxu0
  %v703 = vadd.f32 0.0, %v702
  %v704 = vpop.f32.mrf.mxu0
  %705 = vdwg.mxu0
  %706 = vmatpush.bf16.msra.mxu0 %v561
  %707 = vmatpush.bf16.msra.mxu0 %v557
  %708 = vmatpush.bf16.msra.mxu0 %v553
  %709 = vmatpush.bf16.msra.mxu0 %v549
  %710 = vmatpush.bf16.msra.mxu0 %v545
  %711 = vmatpush.bf16.msra.mxu0 %v541
  %712 = vmatpush.bf16.msra.mxu0 %v537
  %713 = vmatpush.bf16.msra.mxu0 %v533
  %714 = vmatmul.bf16.gmra.mxu0 %v679
  %v715 = vpop.f32.mrf.mxu0
  %v716 = vadd.f32 0.0, %v715
  %v717 = vpop.f32.mrf.mxu0
  %718 = vdwg.mxu0
  %719 = vmatpush.bf16.msra.mxu0 %v562
  %720 = vmatpush.bf16.msra.mxu0 %v558
  %721 = vmatpush.bf16.msra.mxu0 %v554
  %722 = vmatpush.bf16.msra.mxu0 %v550
  %723 = vmatpush.bf16.msra.mxu0 %v546
  %724 = vmatpush.bf16.msra.mxu0 %v542
  %725 = vmatpush.bf16.msra.mxu0 %v538
  %726 = vmatpush.bf16.msra.mxu0 %v534
  %727 = vmatmul.bf16.gmra.mxu0 %v679
  %v728 = vpop.f32.mrf.mxu0
  %v729 = vadd.f32 0.0, %v728
  %v730 = vpop.f32.mrf.mxu0
  %731 = vdwg.mxu0
  %v732 = vadd.f32 %v675, %v690
  %v733 = vadd.f32 %v676, %v703
  %v734 = vadd.f32 %v677, %v716
  %v735 = vadd.f32 %v678, %v729
  %v736 = vsub.f32 0.0, %v732
  %v737 = vmul.f32 %v736, 1.442695
  %v738 = vpow.pop %v737
  %v739 = vadd.f32 %v738, 1.0
  %v740 = vrcp.pop %v739
  %v741 = vsub.f32 0.0, %v733
  %v742 = vmul.f32 %v741, 1.442695
  %v743 = vpow.pop %v742
  %v744 = vadd.f32 %v743, 1.0
  %v745 = vrcp.pop %v744
  %v746 = vtanh.pop %v734
  %v747 = vsub.f32 0.0, %v735
  %v748 = vmul.f32 %v747, 1.442695
  %v749 = vpow.pop %v748
  %v750 = vadd.f32 %v749, 1.0
  %v751 = vrcp.pop %v750
  %v752 = vmul.f32 %v745, %v669
  %v753 = vmul.f32 %v740, %v746
  %v754 = vadd.f32 %v752, %v753
  %v755 = vtanh.pop %v754
  %v756 = vmul.f32 %v751, %v755
  %s757 = smul.u32 2, 4
  %s758 = smul.addr %s757, 8
  %s759 = scalar_lea.vmem [#allocation4], %s758
  %v760 = vld [vmem:[%s759] sm:$0xff]
  %v761 = vld [vmem:[%s759 + $0x8] sm:$0xff]
  %v762 = vld [vmem:[%s759 + $0x10] sm:$0xff]
  %v763 = vld [vmem:[%s759 + $0x18] sm:$0xff]
  %v764 = vpack.c.bf16 %v756, %v756
  %765 = vmatpush.bf16.msra.mxu0 %v559
  %766 = vmatpush.bf16.msra.mxu0 %v555
  %767 = vmatpush.bf16.msra.mxu0 %v551
  %768 = vmatpush.bf16.msra.mxu0 %v547
  %769 = vmatpush.bf16.msra.mxu0 %v543
  %770 = vmatpush.bf16.msra.mxu0 %v539
  %771 = vmatpush.bf16.msra.mxu0 %v535
  %772 = vmatpush.bf16.msra.mxu0 %v531
  %773 = vmatmul.bf16.gmra.mxu0 %v764
  %v774 = vpop.f32.mrf.mxu0
  %v775 = vadd.f32 0.0, %v774
  %v776 = vpop.f32.mrf.mxu0
  %777 = vdwg.mxu0
  %778 = vmatpush.bf16.msra.mxu0 %v560
  %779 = vmatpush.bf16.msra.mxu0 %v556
  %780 = vmatpush.bf16.msra.mxu0 %v552
  %781 = vmatpush.bf16.msra.mxu0 %v548
  %782 = vmatpush.bf16.msra.mxu0 %v544
  %783 = vmatpush.bf16.msra.mxu0 %v540
  %784 = vmatpush.bf16.msra.mxu0 %v536
  %785 = vmatpush.bf16.msra.mxu0 %v532
  %786 = vmatmul.bf16.gmra.mxu0 %v764
  %v787 = vpop.f32.mrf.mxu0
  %v788 = vadd.f32 0.0, %v787
  %v789 = vpop.f32.mrf.mxu0
  %790 = vdwg.mxu0
  %791 = vmatpush.bf16.msra.mxu0 %v561
  %792 = vmatpush.bf16.msra.mxu0 %v557
  %793 = vmatpush.bf16.msra.mxu0 %v553
  %794 = vmatpush.bf16.msra.mxu0 %v549
  %795 = vmatpush.bf16.msra.mxu0 %v545
  %796 = vmatpush.bf16.msra.mxu0 %v541
  %797 = vmatpush.bf16.msra.mxu0 %v537
  %798 = vmatpush.bf16.msra.mxu0 %v533
  %799 = vmatmul.bf16.gmra.mxu0 %v764
  %v800 = vpop.f32.mrf.mxu0
  %v801 = vadd.f32 0.0, %v800
  %v802 = vpop.f32.mrf.mxu0
  %803 = vdwg.mxu0
  %804 = vmatpush.bf16.msra.mxu0 %v562
  %805 = vmatpush.bf16.msra.mxu0 %v558
  %806 = vmatpush.bf16.msra.mxu0 %v554
  %807 = vmatpush.bf16.msra.mxu0 %v550
  %808 = vmatpush.bf16.msra.mxu0 %v546
  %809 = vmatpush.bf16.msra.mxu0 %v542
  %810 = vmatpush.bf16.msra.mxu0 %v538
  %811 = vmatpush.bf16.msra.mxu0 %v534
  %812 = vmatmul.bf16.gmra.mxu0 %v764
  %v813 = vpop.f32.mrf.mxu0
  %v814 = vadd.f32 0.0, %v813
  %v815 = vpop.f32.mrf.mxu0
  %816 = vdwg.mxu0
  %v817 = vadd.f32 %v760, %v775
  %v818 = vadd.f32 %v761, %v788
  %v819 = vadd.f32 %v762, %v801
  %v820 = vadd.f32 %v763, %v814
  %v821 = vsub.f32 0.0, %v817
  %v822 = vmul.f32 %v821, 1.442695
  %v823 = vpow.pop %v822
  %v824 = vadd.f32 %v823, 1.0
  %v825 = vrcp.pop %v824
  %v826 = vsub.f32 0.0, %v818
  %v827 = vmul.f32 %v826, 1.442695
  %v828 = vpow.pop %v827
  %v829 = vadd.f32 %v828, 1.0
  %v830 = vrcp.pop %v829
  %v831 = vtanh.pop %v819
  %v832 = vsub.f32 0.0, %v820
  %v833 = vmul.f32 %v832, 1.442695
  %v834 = vpow.pop %v833
  %v835 = vadd.f32 %v834, 1.0
  %v836 = vrcp.pop %v835
  %v837 = vmul.f32 %v830, %v754
  %v838 = vmul.f32 %v825, %v831
  %v839 = vadd.f32 %v837, %v838
  %v840 = vtanh.pop %v839
  %v841 = vmul.f32 %v836, %v840
  %s842 = smul.u32 3, 4
  %s843 = smul.addr %s842, 8
  %s844 = scalar_lea.vmem [#allocation4], %s843
  %v845 = vld [vmem:[%s844] sm:$0xff]
  %v846 = vld [vmem:[%s844 + $0x8] sm:$0xff]
  %v847 = vld [vmem:[%s844 + $0x10] sm:$0xff]
  %v848 = vld [vmem:[%s844 + $0x18] sm:$0xff]
  %v849 = vpack.c.bf16 %v841, %v841
  %850 = vmatpush.bf16.msra.mxu0 %v559
  %851 = vmatpush.bf16.msra.mxu0 %v555
  %852 = vmatpush.bf16.msra.mxu0 %v551
  %853 = vmatpush.bf16.msra.mxu0 %v547
  %854 = vmatpush.bf16.msra.mxu0 %v543
  %855 = vmatpush.bf16.msra.mxu0 %v539
  %856 = vmatpush.bf16.msra.mxu0 %v535
  %857 = vmatpush.bf16.msra.mxu0 %v531
  %858 = vmatmul.bf16.gmra.mxu0 %v849
  %v859 = vpop.f32.mrf.mxu0
  %v860 = vadd.f32 0.0, %v859
  %v861 = vpop.f32.mrf.mxu0
  %862 = vdwg.mxu0
  %863 = vmatpush.bf16.msra.mxu0 %v560
  %864 = vmatpush.bf16.msra.mxu0 %v556
  %865 = vmatpush.bf16.msra.mxu0 %v552
  %866 = vmatpush.bf16.msra.mxu0 %v548
  %867 = vmatpush.bf16.msra.mxu0 %v544
  %868 = vmatpush.bf16.msra.mxu0 %v540
  %869 = vmatpush.bf16.msra.mxu0 %v536
  %870 = vmatpush.bf16.msra.mxu0 %v532
  %871 = vmatmul.bf16.gmra.mxu0 %v849
  %v872 = vpop.f32.mrf.mxu0
  %v873 = vadd.f32 0.0, %v872
  %v874 = vpop.f32.mrf.mxu0
  %875 = vdwg.mxu0
  %876 = vmatpush.bf16.msra.mxu0 %v561
  %877 = vmatpush.bf16.msra.mxu0 %v557
  %878 = vmatpush.bf16.msra.mxu0 %v553
  %879 = vmatpush.bf16.msra.mxu0 %v549
  %880 = vmatpush.bf16.msra.mxu0 %v545
  %881 = vmatpush.bf16.msra.mxu0 %v541
  %882 = vmatpush.bf16.msra.mxu0 %v537
  %883 = vmatpush.bf16.msra.mxu0 %v533
  %884 = vmatmul.bf16.gmra.mxu0 %v849
  %v885 = vpop.f32.mrf.mxu0
  %v886 = vadd.f32 0.0, %v885
  %v887 = vpop.f32.mrf.mxu0
  %888 = vdwg.mxu0
  %889 = vmatpush.bf16.msra.mxu0 %v562
  %890 = vmatpush.bf16.msra.mxu0 %v558
  %891 = vmatpush.bf16.msra.mxu0 %v554
  %892 = vmatpush.bf16.msra.mxu0 %v550
  %893 = vmatpush.bf16.msra.mxu0 %v546
  %894 = vmatpush.bf16.msra.mxu0 %v542
  %895 = vmatpush.bf16.msra.mxu0 %v538
  %896 = vmatpush.bf16.msra.mxu0 %v534
  %897 = vmatmul.bf16.gmra.mxu0 %v849
  %v898 = vpop.f32.mrf.mxu0
  %v899 = vadd.f32 0.0, %v898
  %v900 = vpop.f32.mrf.mxu0
  %901 = vdwg.mxu0
  %v902 = vadd.f32 %v845, %v860
  %v903 = vadd.f32 %v846, %v873
  %v904 = vadd.f32 %v847, %v886
  %v905 = vadd.f32 %v848, %v899
  %v906 = vsub.f32 0.0, %v902
  %v907 = vmul.f32 %v906, 1.442695
  %v908 = vpow.pop %v907
  %v909 = vadd.f32 %v908, 1.0
  %v910 = vrcp.pop %v909
  %v911 = vsub.f32 0.0, %v903
  %v912 = vmul.f32 %v911, 1.442695
  %v913 = vpow.pop %v912
  %v914 = vadd.f32 %v913, 1.0
  %v915 = vrcp.pop %v914
  %v916 = vtanh.pop %v904
  %v917 = vsub.f32 0.0, %v905
  %v918 = vmul.f32 %v917, 1.442695
  %v919 = vpow.pop %v918
  %v920 = vadd.f32 %v919, 1.0
  %v921 = vrcp.pop %v920
  %v922 = vmul.f32 %v915, %v839
  %v923 = vmul.f32 %v910, %v916
  %v924 = vadd.f32 %v922, %v923
  %v925 = vtanh.pop %v924
  %v926 = vmul.f32 %v921, %v925
  %s927 = smul.u32 4, 4
  %s928 = smul.addr %s927, 8
  %s929 = scalar_lea.vmem [#allocation4], %s928
  %v930 = vld [vmem:[%s929] sm:$0xff]
  %v931 = vld [vmem:[%s929 + $0x8] sm:$0xff]
  %v932 = vld [vmem:[%s929 + $0x10] sm:$0xff]
  %v933 = vld [vmem:[%s929 + $0x18] sm:$0xff]
  %v934 = vpack.c.bf16 %v926, %v926
  %935 = vmatpush.bf16.msra.mxu0 %v559
  %936 = vmatpush.bf16.msra.mxu0 %v555
  %937 = vmatpush.bf16.msra.mxu0 %v551
  %938 = vmatpush.bf16.msra.mxu0 %v547
  %939 = vmatpush.bf16.msra.mxu0 %v543
  %940 = vmatpush.bf16.msra.mxu0 %v539
  %941 = vmatpush.bf16.msra.mxu0 %v535
  %942 = vmatpush.bf16.msra.mxu0 %v531
  %943 = vmatmul.bf16.gmra.mxu0 %v934
  %v944 = vpop.f32.mrf.mxu0
  %v945 = vadd.f32 0.0, %v944
  %v946 = vpop.f32.mrf.mxu0
  %947 = vdwg.mxu0
  %948 = vmatpush.bf16.msra.mxu0 %v560
  %949 = vmatpush.bf16.msra.mxu0 %v556
  %950 = vmatpush.bf16.msra.mxu0 %v552
  %951 = vmatpush.bf16.msra.mxu0 %v548
  %952 = vmatpush.bf16.msra.mxu0 %v544
  %953 = vmatpush.bf16.msra.mxu0 %v540
  %954 = vmatpush.bf16.msra.mxu0 %v536
  %955 = vmatpush.bf16.msra.mxu0 %v532
  %956 = vmatmul.bf16.gmra.mxu0 %v934
  %v957 = vpop.f32.mrf.mxu0
  %v958 = vadd.f32 0.0, %v957
  %v959 = vpop.f32.mrf.mxu0
  %960 = vdwg.mxu0
  %961 = vmatpush.bf16.msra.mxu0 %v561
  %962 = vmatpush.bf16.msra.mxu0 %v557
  %963 = vmatpush.bf16.msra.mxu0 %v553
  %964 = vmatpush.bf16.msra.mxu0 %v549
  %965 = vmatpush.bf16.msra.mxu0 %v545
  %966 = vmatpush.bf16.msra.mxu0 %v541
  %967 = vmatpush.bf16.msra.mxu0 %v537
  %968 = vmatpush.bf16.msra.mxu0 %v533
  %969 = vmatmul.bf16.gmra.mxu0 %v934
  %v970 = vpop.f32.mrf.mxu0
  %v971 = vadd.f32 0.0, %v970
  %v972 = vpop.f32.mrf.mxu0
  %973 = vdwg.mxu0
  %974 = vmatpush.bf16.msra.mxu0 %v562
  %975 = vmatpush.bf16.msra.mxu0 %v558
  %976 = vmatpush.bf16.msra.mxu0 %v554
  %977 = vmatpush.bf16.msra.mxu0 %v550
  %978 = vmatpush.bf16.msra.mxu0 %v546
  %979 = vmatpush.bf16.msra.mxu0 %v542
  %980 = vmatpush.bf16.msra.mxu0 %v538
  %981 = vmatpush.bf16.msra.mxu0 %v534
  %982 = vmatmul.bf16.gmra.mxu0 %v934
  %v983 = vpop.f32.mrf.mxu0
  %v984 = vadd.f32 0.0, %v983
  %v985 = vpop.f32.mrf.mxu0
  %986 = vdwg.mxu0
  %v987 = vadd.f32 %v930, %v945
  %v988 = vadd.f32 %v931, %v958
  %v989 = vadd.f32 %v932, %v971
  %v990 = vadd.f32 %v933, %v984
  %v991 = vsub.f32 0.0, %v987
  %v992 = vmul.f32 %v991, 1.442695
  %v993 = vpow.pop %v992
  %v994 = vadd.f32 %v993, 1.0
  %v995 = vrcp.pop %v994
  %v996 = vsub.f32 0.0, %v988
  %v997 = vmul.f32 %v996, 1.442695
  %v998 = vpow.pop %v997
  %v999 = vadd.f32 %v998, 1.0
  %v1000 = vrcp.pop %v999
  %v1001 = vtanh.pop %v989
  %v1002 = vsub.f32 0.0, %v990
  %v1003 = vmul.f32 %v1002, 1.442695
  %v1004 = vpow.pop %v1003
  %v1005 = vadd.f32 %v1004, 1.0
  %v1006 = vrcp.pop %v1005
  %v1007 = vmul.f32 %v1000, %v924
  %v1008 = vmul.f32 %v995, %v1001
  %v1009 = vadd.f32 %v1007, %v1008
  %v1010 = vtanh.pop %v1009
  %v1011 = vmul.f32 %v1006, %v1010
  %s1012 = smul.u32 5, 4
  %s1013 = smul.addr %s1012, 8
  %s1014 = scalar_lea.vmem [#allocation4], %s1013
  %v1015 = vld [vmem:[%s1014] sm:$0xff]
  %v1016 = vld [vmem:[%s1014 + $0x8] sm:$0xff]
  %v1017 = vld [vmem:[%s1014 + $0x10] sm:$0xff]
  %v1018 = vld [vmem:[%s1014 + $0x18] sm:$0xff]
  %v1019 = vpack.c.bf16 %v1011, %v1011
  %1020 = vmatpush.bf16.msra.mxu0 %v559
  %1021 = vmatpush.bf16.msra.mxu0 %v555
  %1022 = vmatpush.bf16.msra.mxu0 %v551
  %1023 = vmatpush.bf16.msra.mxu0 %v547
  %1024 = vmatpush.bf16.msra.mxu0 %v543
  %1025 = vmatpush.bf16.msra.mxu0 %v539
  %1026 = vmatpush.bf16.msra.mxu0 %v535
  %1027 = vmatpush.bf16.msra.mxu0 %v531
  %1028 = vmatmul.bf16.gmra.mxu0 %v1019
  %v1029 = vpop.f32.mrf.mxu0
  %v1030 = vadd.f32 0.0, %v1029
  %v1031 = vpop.f32.mrf.mxu0
  %1032 = vdwg.mxu0
  %1033 = vmatpush.bf16.msra.mxu0 %v560
  %1034 = vmatpush.bf16.msra.mxu0 %v556
  %1035 = vmatpush.bf16.msra.mxu0 %v552
  %1036 = vmatpush.bf16.msra.mxu0 %v548
  %1037 = vmatpush.bf16.msra.mxu0 %v544
  %1038 = vmatpush.bf16.msra.mxu0 %v540
  %1039 = vmatpush.bf16.msra.mxu0 %v536
  %1040 = vmatpush.bf16.msra.mxu0 %v532
  %1041 = vmatmul.bf16.gmra.mxu0 %v1019
  %v1042 = vpop.f32.mrf.mxu0
  %v1043 = vadd.f32 0.0, %v1042
  %v1044 = vpop.f32.mrf.mxu0
  %1045 = vdwg.mxu0
  %1046 = vmatpush.bf16.msra.mxu0 %v561
  %1047 = vmatpush.bf16.msra.mxu0 %v557
  %1048 = vmatpush.bf16.msra.mxu0 %v553
  %1049 = vmatpush.bf16.msra.mxu0 %v549
  %1050 = vmatpush.bf16.msra.mxu0 %v545
  %1051 = vmatpush.bf16.msra.mxu0 %v541
  %1052 = vmatpush.bf16.msra.mxu0 %v537
  %1053 = vmatpush.bf16.msra.mxu0 %v533
  %1054 = vmatmul.bf16.gmra.mxu0 %v1019
  %v1055 = vpop.f32.mrf.mxu0
  %v1056 = vadd.f32 0.0, %v1055
  %v1057 = vpop.f32.mrf.mxu0
  %1058 = vdwg.mxu0
  %1059 = vmatpush.bf16.msra.mxu0 %v562
  %1060 = vmatpush.bf16.msra.mxu0 %v558
  %1061 = vmatpush.bf16.msra.mxu0 %v554
  %1062 = vmatpush.bf16.msra.mxu0 %v550
  %1063 = vmatpush.bf16.msra.mxu0 %v546
  %1064 = vmatpush.bf16.msra.mxu0 %v542
  %1065 = vmatpush.bf16.msra.mxu0 %v538
  %1066 = vmatpush.bf16.msra.mxu0 %v534
  %1067 = vmatmul.bf16.gmra.mxu0 %v1019
  %v1068 = vpop.f32.mrf.mxu0
  %v1069 = vadd.f32 0.0, %v1068
  %v1070 = vpop.f32.mrf.mxu0
  %1071 = vdwg.mxu0
  %v1072 = vadd.f32 %v1015, %v1030
  %v1073 = vadd.f32 %v1016, %v1043
  %v1074 = vadd.f32 %v1017, %v1056
  %v1075 = vadd.f32 %v1018, %v1069
  %v1076 = vsub.f32 0.0, %v1072
  %v1077 = vmul.f32 %v1076, 1.442695
  %v1078 = vpow.pop %v1077
  %v1079 = vadd.f32 %v1078, 1.0
  %v1080 = vrcp.pop %v1079
  %v1081 = vsub.f32 0.0, %v1073
  %v1082 = vmul.f32 %v1081, 1.442695
  %v1083 = vpow.pop %v1082
  %v1084 = vadd.f32 %v1083, 1.0
  %v1085 = vrcp.pop %v1084
  %v1086 = vtanh.pop %v1074
  %v1087 = vsub.f32 0.0, %v1075
  %v1088 = vmul.f32 %v1087, 1.442695
  %v1089 = vpow.pop %v1088
  %v1090 = vadd.f32 %v1089, 1.0
  %v1091 = vrcp.pop %v1090
  %v1092 = vmul.f32 %v1085, %v1009
  %v1093 = vmul.f32 %v1080, %v1086
  %v1094 = vadd.f32 %v1092, %v1093
  %v1095 = vtanh.pop %v1094
  %v1096 = vmul.f32 %v1091, %v1095
  %s1097 = smul.u32 6, 4
  %s1098 = smul.addr %s1097, 8
  %s1099 = scalar_lea.vmem [#allocation4], %s1098
  %v1100 = vld [vmem:[%s1099] sm:$0xff]
  %v1101 = vld [vmem:[%s1099 + $0x8] sm:$0xff]
  %v1102 = vld [vmem:[%s1099 + $0x10] sm:$0xff]
  %v1103 = vld [vmem:[%s1099 + $0x18] sm:$0xff]
  %v1104 = vpack.c.bf16 %v1096, %v1096
  %1105 = vmatpush.bf16.msra.mxu0 %v559
  %1106 = vmatpush.bf16.msra.mxu0 %v555
  %1107 = vmatpush.bf16.msra.mxu0 %v551
  %1108 = vmatpush.bf16.msra.mxu0 %v547
  %1109 = vmatpush.bf16.msra.mxu0 %v543
  %1110 = vmatpush.bf16.msra.mxu0 %v539
  %1111 = vmatpush.bf16.msra.mxu0 %v535
  %1112 = vmatpush.bf16.msra.mxu0 %v531
  %1113 = vmatmul.bf16.gmra.mxu0 %v1104
  %v1114 = vpop.f32.mrf.mxu0
  %v1115 = vadd.f32 0.0, %v1114
  %v1116 = vpop.f32.mrf.mxu0
  %1117 = vdwg.mxu0
  %1118 = vmatpush.bf16.msra.mxu0 %v560
  %1119 = vmatpush.bf16.msra.mxu0 %v556
  %1120 = vmatpush.bf16.msra.mxu0 %v552
  %1121 = vmatpush.bf16.msra.mxu0 %v548
  %1122 = vmatpush.bf16.msra.mxu0 %v544
  %1123 = vmatpush.bf16.msra.mxu0 %v540
  %1124 = vmatpush.bf16.msra.mxu0 %v536
  %1125 = vmatpush.bf16.msra.mxu0 %v532
  %1126 = vmatmul.bf16.gmra.mxu0 %v1104
  %v1127 = vpop.f32.mrf.mxu0
  %v1128 = vadd.f32 0.0, %v1127
  %v1129 = vpop.f32.mrf.mxu0
  %1130 = vdwg.mxu0
  %1131 = vmatpush.bf16.msra.mxu0 %v561
  %1132 = vmatpush.bf16.msra.mxu0 %v557
  %1133 = vmatpush.bf16.msra.mxu0 %v553
  %1134 = vmatpush.bf16.msra.mxu0 %v549
  %1135 = vmatpush.bf16.msra.mxu0 %v545
  %1136 = vmatpush.bf16.msra.mxu0 %v541
  %1137 = vmatpush.bf16.msra.mxu0 %v537
  %1138 = vmatpush.bf16.msra.mxu0 %v533
  %1139 = vmatmul.bf16.gmra.mxu0 %v1104
  %v1140 = vpop.f32.mrf.mxu0
  %v1141 = vadd.f32 0.0, %v1140
  %v1142 = vpop.f32.mrf.mxu0
  %1143 = vdwg.mxu0
  %1144 = vmatpush.bf16.msra.mxu0 %v562
  %1145 = vmatpush.bf16.msra.mxu0 %v558
  %1146 = vmatpush.bf16.msra.mxu0 %v554
  %1147 = vmatpush.bf16.msra.mxu0 %v550
  %1148 = vmatpush.bf16.msra.mxu0 %v546
  %1149 = vmatpush.bf16.msra.mxu0 %v542
  %1150 = vmatpush.bf16.msra.mxu0 %v538
  %1151 = vmatpush.bf16.msra.mxu0 %v534
  %1152 = vmatmul.bf16.gmra.mxu0 %v1104
  %v1153 = vpop.f32.mrf.mxu0
  %v1154 = vadd.f32 0.0, %v1153
  %v1155 = vpop.f32.mrf.mxu0
  %1156 = vdwg.mxu0
  %v1157 = vadd.f32 %v1100, %v1115
  %v1158 = vadd.f32 %v1101, %v1128
  %v1159 = vadd.f32 %v1102, %v1141
  %v1160 = vadd.f32 %v1103, %v1154
  %v1161 = vsub.f32 0.0, %v1157
  %v1162 = vmul.f32 %v1161, 1.442695
  %v1163 = vpow.pop %v1162
  %v1164 = vadd.f32 %v1163, 1.0
  %v1165 = vrcp.pop %v1164
  %v1166 = vsub.f32 0.0, %v1158
  %v1167 = vmul.f32 %v1166, 1.442695
  %v1168 = vpow.pop %v1167
  %v1169 = vadd.f32 %v1168, 1.0
  %v1170 = vrcp.pop %v1169
  %v1171 = vtanh.pop %v1159
  %v1172 = vsub.f32 0.0, %v1160
  %v1173 = vmul.f32 %v1172, 1.442695
  %v1174 = vpow.pop %v1173
  %v1175 = vadd.f32 %v1174, 1.0
  %v1176 = vrcp.pop %v1175
  %v1177 = vmul.f32 %v1170, %v1094
  %v1178 = vmul.f32 %v1165, %v1171
  %v1179 = vadd.f32 %v1177, %v1178
  %v1180 = vtanh.pop %v1179
  %v1181 = vmul.f32 %v1176, %v1180
  %s1182 = smul.u32 7, 4
  %s1183 = smul.addr %s1182, 8
  %s1184 = scalar_lea.vmem [#allocation4], %s1183
  %v1185 = vld [vmem:[%s1184] sm:$0xff]
  %v1186 = vld [vmem:[%s1184 + $0x8] sm:$0xff]
  %v1187 = vld [vmem:[%s1184 + $0x10] sm:$0xff]
  %v1188 = vld [vmem:[%s1184 + $0x18] sm:$0xff]
  %v1189 = vpack.c.bf16 %v1181, %v1181
  %1190 = vmatpush.bf16.msra.mxu0 %v559
  %1191 = vmatpush.bf16.msra.mxu0 %v555
  %1192 = vmatpush.bf16.msra.mxu0 %v551
  %1193 = vmatpush.bf16.msra.mxu0 %v547
  %1194 = vmatpush.bf16.msra.mxu0 %v543
  %1195 = vmatpush.bf16.msra.mxu0 %v539
  %1196 = vmatpush.bf16.msra.mxu0 %v535
  %1197 = vmatpush.bf16.msra.mxu0 %v531
  %1198 = vmatmul.bf16.gmra.mxu0 %v1189
  %v1199 = vpop.f32.mrf.mxu0
  %v1200 = vadd.f32 0.0, %v1199
  %v1201 = vpop.f32.mrf.mxu0
  %1202 = vdwg.mxu0
  %1203 = vmatpush.bf16.msra.mxu0 %v560
  %1204 = vmatpush.bf16.msra.mxu0 %v556
  %1205 = vmatpush.bf16.msra.mxu0 %v552
  %1206 = vmatpush.bf16.msra.mxu0 %v548
  %1207 = vmatpush.bf16.msra.mxu0 %v544
  %1208 = vmatpush.bf16.msra.mxu0 %v540
  %1209 = vmatpush.bf16.msra.mxu0 %v536
  %1210 = vmatpush.bf16.msra.mxu0 %v532
  %1211 = vmatmul.bf16.gmra.mxu0 %v1189
  %v1212 = vpop.f32.mrf.mxu0
  %v1213 = vadd.f32 0.0, %v1212
  %v1214 = vpop.f32.mrf.mxu0
  %1215 = vdwg.mxu0
  %1216 = vmatpush.bf16.msra.mxu0 %v561
  %1217 = vmatpush.bf16.msra.mxu0 %v557
  %1218 = vmatpush.bf16.msra.mxu0 %v553
  %1219 = vmatpush.bf16.msra.mxu0 %v549
  %1220 = vmatpush.bf16.msra.mxu0 %v545
  %1221 = vmatpush.bf16.msra.mxu0 %v541
  %1222 = vmatpush.bf16.msra.mxu0 %v537
  %1223 = vmatpush.bf16.msra.mxu0 %v533
  %1224 = vmatmul.bf16.gmra.mxu0 %v1189
  %v1225 = vpop.f32.mrf.mxu0
  %v1226 = vadd.f32 0.0, %v1225
  %v1227 = vpop.f32.mrf.mxu0
  %1228 = vdwg.mxu0
  %1229 = vmatpush.bf16.msra.mxu0 %v562
  %1230 = vmatpush.bf16.msra.mxu0 %v558
  %1231 = vmatpush.bf16.msra.mxu0 %v554
  %1232 = vmatpush.bf16.msra.mxu0 %v550
  %1233 = vmatpush.bf16.msra.mxu0 %v546
  %1234 = vmatpush.bf16.msra.mxu0 %v542
  %1235 = vmatpush.bf16.msra.mxu0 %v538
  %1236 = vmatpush.bf16.msra.mxu0 %v534
  %1237 = vmatmul.bf16.gmra.mxu0 %v1189
  %v1238 = vpop.f32.mrf.mxu0
  %v1239 = vadd.f32 0.0, %v1238
  %v1240 = vpop.f32.mrf.mxu0
  %1241 = vdwg.mxu0
  %v1242 = vadd.f32 %v1185, %v1200
  %v1243 = vadd.f32 %v1186, %v1213
  %v1244 = vadd.f32 %v1187, %v1226
  %v1245 = vadd.f32 %v1188, %v1239
  %v1246 = vsub.f32 0.0, %v1242
  %v1247 = vmul.f32 %v1246, 1.442695
  %v1248 = vpow.pop %v1247
  %v1249 = vadd.f32 %v1248, 1.0
  %v1250 = vrcp.pop %v1249
  %v1251 = vsub.f32 0.0, %v1243
  %v1252 = vmul.f32 %v1251, 1.442695
  %v1253 = vpow.pop %v1252
  %v1254 = vadd.f32 %v1253, 1.0
  %v1255 = vrcp.pop %v1254
  %v1256 = vtanh.pop %v1244
  %v1257 = vsub.f32 0.0, %v1245
  %v1258 = vmul.f32 %v1257, 1.442695
  %v1259 = vpow.pop %v1258
  %v1260 = vadd.f32 %v1259, 1.0
  %v1261 = vrcp.pop %v1260
  %v1262 = vmul.f32 %v1255, %v1179
  %v1263 = vmul.f32 %v1250, %v1256
  %v1264 = vadd.f32 %v1262, %v1263
  %v1265 = vtanh.pop %v1264
  %v1266 = vmul.f32 %v1261, %v1265
  %1267 = vst [vmem:[#allocation2] sm:$0xff] %v1266
  %1268 = vst [vmem:[#allocation3] sm:$0xff] %v1264
  // Predicated region
  $region30: #{sentiment_model_forward.1} parent=0 // pred_check
    %p1269 = pneg %p25
  $region31: #{sentiment_model_forward.1} parent=0 // pred_check_branch
    %1271 = sbr.rel (%p1269) target = $region33
  $region32: #{sentiment_model_forward.1} parent=0 // pred_region
    %v1272 = vld [vmem:[%s4] sm:$0x1]
    %v1274 = vperm.slane %v1272, 0
    %v1276 = vmul.f32 %v1266, %v1274
    %1277 = vadd.xlane.f32.xlu0 %v1276
    %v1278 = vpop.xlane.xlu0 %1277
    %v1279 = vld [vmem:[#allocation5] sm:$0x1]
    %v1281 = vperm.slane %v1279, 0
    %v1283 = vadd.f32 %v1278, %v1281
    %v1284 = vxor.u32 %v1283, 2147483648
    %v1285 = vmul.f32 %v1284, 1.442695
    %v1286 = vpow.pop %v1285
    %v1287 = vadd.f32 %v1286, 1.0
    %v1288 = vrcp.pop %v1287
    %v1289 = vmul.f32 %v1287, %v1288
    %v1290 = vsub.f32 1.0, %v1289
    %v1291 = vmul.f32 %v1288, %v1290
    %v1292 = vadd.f32 %v1288, %v1291
    %vm1293 = vweird.f32 %v1287
    %vm1294 = vweird.f32 %v1288
    %vm1295 = vmor %vm1293, %vm1294
    %v1296 = vsel %vm1295, %v1288, %v1292
    %v1297 = vand.u32 2147483647, %v1287
    %vm1298 = vcmp.eq.f32.partialorder %v1297, 8.507059e+37
    %v1299 = vand.u32 %v1287, 2147483648
    %v1300 = vor.u32 1.1754944e-38, %v1299
    %v1301 = vsel %vm1298, %v1300, %v1296
    %v1302 = vmul.f32 1.0, %v1301
    %1304 = vset.pattern.permute.xlu0 0
    %1305 = vperm.xlu0 %1304, %v1302
    %v1306 = vpop.permute.xlu0 %1305
    %1308 = vst [vmem:[%s6] sm:$0xff] %v1306
  $region33: #{sentiment_model_forward.1} parent=0 // pred_fallthru
    _
  // Predicated region
  $region34: #{sentiment_model_forward.1} parent=0 // pred_check
    _
  $region35: #{sentiment_model_forward.1} parent=0 // pred_check_branch
    %1310 = sbr.rel (0) target = $region37
  $region36: #{sentiment_model_forward.1} parent=0 // pred_region
    _
  $region37: #{sentiment_model_forward.1} parent=0 // pred_fallthru
    _
  // Predicated region
  $region38: #{sentiment_model_forward.1} parent=0 // pred_check
    _
  $region39: #{sentiment_model_forward.1} parent=0 // pred_check_branch
    %1312 = sbr.rel (0) target = $region41
  $region40: #{sentiment_model_forward.1} parent=0 // pred_region
    _
  $region41: #{sentiment_model_forward.1} parent=0 // pred_fallthru
    _

</llo_original>
